<compile_context>
chip_gen: v5e
topology: v5e:2x2
jax: 0.10.0
libtpu: 0.0.40
codegen_flags: <defaults>
</compile_context>

<pallas_src>
import jax
import jax.numpy as jnp
import numpy as np
from jax.experimental import pallas as pl
from jax.experimental.pallas import tpu as pltpu

EPS = 1e-5


# ----------------------------------------------------------------------------- kernels
def _interior_mask(hp, wp):
    """(hp, wp, 1) bool mask: True on the H x W interior, False on the 1-px halo."""
    row = jax.lax.broadcasted_iota(jnp.int32, (hp, wp, 1), 0)
    col = jax.lax.broadcasted_iota(jnp.int32, (hp, wp, 1), 1)
    return (row >= 1) & (row <= hp - 2) & (col >= 1) & (col <= wp - 2)


def _conv3x3_taps(act, w_ref, h, w, acc):
    """acc += 3x3 'SAME' conv of the zero-bordered activation slab `act`.

    Per-tap accumulation (9 small dots) instead of a materialized (H*W, 9*C)
    im2col slab: no 9x activation copy and no big VMEM temporary; each tap's K is
    the true channel count.  `w_ref` is a (9, Cin, Cout) VMEM ref."""
    ci = act.shape[-1]
    for k in range(9):
        ky, kx = k // 3, k % 3
        tap = act[ky:ky + h, kx:kx + w, :].reshape(h * w, ci)
        acc = acc + jnp.dot(tap, w_ref[k], preferred_element_type=jnp.float32)
    return acc


def _pass1_kernel(x_ref, st_ref, w_ref, b_ref, h1_ref, sum_ref, ssq_ref):
    """h1 = conv1(relu(x*scale1 + shift1)) + b1, plus BN2 partial sums (one sample/step)."""
    xp = x_ref[0]                                   # (H+2, W+2, Cin) f32, zero spatial halo
    hp, wp, _ = xp.shape
    h, w = hp - 2, wp - 2
    co = b_ref.shape[-1]
    scale = st_ref[0, 0:1, :]                       # (1, Cin) -> broadcasts over (hp, wp, Cin)
    shift = st_ref[0, 1:2, :]
    act = jnp.maximum(xp * scale + shift, 0.0)      # fused BN affine + cond. modulation + ReLU
    act = jnp.where(_interior_mask(hp, wp), act, 0.0)   # conv 'SAME' zero padding
    acc = _conv3x3_taps(act, w_ref, h, w, jnp.zeros((h * w, co), jnp.float32))
    h1 = acc + b_ref[...]                           # (H*W, Cout), conv bias included

    # BN2 partial sums (per sample, per channel): the wrapper only finishes the
    # O(N*C) reduction, so h1 is not re-read from HBM for the batch statistics.
    sum_ref[0] = jnp.sum(h1, axis=0, keepdims=True)
    ssq_ref[0] = jnp.sum(h1 * h1, axis=0, keepdims=True)

    # Interior-only store into the spatially padded h1 buffer.  The 1-px border is
    # left unwritten: pass 2 masks the activation border to zero before its conv
    # (the jnp.where select also discards any NaN/Inf garbage), so the halo bytes
    # are never consumed as data.  This removes the wrapper-level jnp.pad(h1) pass.
    h1_ref[0, 1:h + 1, 1:w + 1, :] = h1.reshape(h, w, co)


def _pass2_kernel(h1_ref, x_ref, st_ref, w2_ref, wsk_ref, b_ref, o_ref):
    """out = conv2(relu(h1*scale2 + shift2)) + skip_1x1(x) + (b2 + skip_b)."""
    hpad = h1_ref[0]                                # (H+2, W+2, Cout); border undefined
    hp, wp, co = hpad.shape
    h, w = hp - 2, wp - 2
    xi = x_ref[0]                                   # (H, W, Cin) unpadded input (skip path)
    ci = xi.shape[-1]
    scale = st_ref[0, 0:1, :]
    shift = st_ref[0, 1:2, :]
    act = jnp.maximum(hpad * scale + shift, 0.0)
    act = jnp.where(_interior_mask(hp, wp), act, 0.0)   # zeroes the halo (incl. any garbage)
    # 1x1 skip conv rides the same f32 accumulator as conv2 (kept in f32 for accuracy).
    acc = jnp.dot(xi.reshape(h * w, ci), wsk_ref[...], preferred_element_type=jnp.float32)
    acc = _conv3x3_taps(act, w2_ref, h, w, acc)
    o_ref[0] = (acc + b_ref[...]).reshape(h, w, co).astype(o_ref.dtype)


# ----------------------------------------------------------------------------- wrapper
def _fold_bn_cond(mean, var, y_emb, bn_w, bn_b, gn_w, gn_b, gb_w, gb_b):
    """Training-mode BN (batch stats, biased var, eps=1e-5) folded with the
    conditional gamma/beta into one per-(sample, channel) scale & shift, (N, 2, C)."""
    inv = jax.lax.rsqrt(var + EPS)
    gamma = y_emb @ gn_w + gn_b[0]                  # (N, C): tiny matmuls hoisted out
    beta = y_emb @ gb_w + gb_b[0]
    scale = gamma * (bn_w[0] * inv)
    shift = gamma * (bn_b[0] - mean * bn_w[0] * inv) + beta
    return jnp.stack([scale, shift], axis=1).astype(jnp.float32)


def resblockg_forward(x_nhwc, y_emb, p):
    N, H, W, Cin = x_nhwc.shape
    Cout = p['conv1_w'].shape[-1]
    # NOTE: H and W multiples of 8 keep the in-kernel (H,W,C)->(H*W,C) reshapes
    # sublane-aligned (true for the shapes this block is used at).

    x32 = x_nhwc.astype(jnp.float32)
    x_pad = jnp.pad(x32, ((0, 0), (1, 1), (1, 1), (0, 0)))   # 1-px conv halo, once

    # ---- BN1 stats (global over N,H,W) + conditional affine, at the pass boundary.
    mean1 = jnp.mean(x32, axis=(0, 1, 2))
    var1 = jnp.mean(jnp.square(x32 - mean1), axis=(0, 1, 2))
    st1 = _fold_bn_cond(mean1, var1, y_emb, p['bn1_w'], p['bn1_b'],
                        p['gn1_w'], p['gn1_b'], p['gb1_w'], p['gb1_b'])

    w1 = p['conv1_w'].reshape(9, Cin, Cout).astype(jnp.float32)
    b1 = p['conv1_b'].astype(jnp.float32)

    cparams = pltpu.CompilerParams(dimension_semantics=("parallel",))

    h1p, ssum, ssq = pl.pallas_call(
        _pass1_kernel,
        grid=(N,),
        in_specs=[
            pl.BlockSpec((1, H + 2, W + 2, Cin), lambda n: (n, 0, 0, 0)),
            pl.BlockSpec((1, 2, Cin), lambda n: (n, 0, 0)),
            pl.BlockSpec((9, Cin, Cout), lambda n: (0, 0, 0)),
            pl.BlockSpec((1, Cout), lambda n: (0, 0)),
        ],
        out_specs=(
            pl.BlockSpec((1, H + 2, W + 2, Cout), lambda n: (n, 0, 0, 0)),
            pl.BlockSpec((1, 1, Cout), lambda n: (n, 0, 0)),
            pl.BlockSpec((1, 1, Cout), lambda n: (n, 0, 0)),
        ),
        out_shape=(
            jax.ShapeDtypeStruct((N, H + 2, W + 2, Cout), jnp.float32),
            jax.ShapeDtypeStruct((N, 1, Cout), jnp.float32),
            jax.ShapeDtypeStruct((N, 1, Cout), jnp.float32),
        ),
        compiler_params=cparams,
        cost_estimate=pl.CostEstimate(
            flops=2 * N * H * W * 9 * Cin * Cout,
            transcendentals=0,
            bytes_accessed=4 * (x_pad.size + N * (H + 2) * (W + 2) * Cout
                                + st1.size + w1.size + b1.size + 2 * N * Cout)),
    )(x_pad, st1, w1, b1)

    # ---- BN2 stats finished from pass-1 partial sums (no HBM re-read of h1).
    cnt = N * H * W
    mean2 = jnp.sum(ssum[:, 0, :], axis=0) / cnt
    var2 = jnp.maximum(jnp.sum(ssq[:, 0, :], axis=0) / cnt - mean2 * mean2, 0.0)
    st2 = _fold_bn_cond(mean2, var2, y_emb, p['bn2_w'], p['bn2_b'],
                        p['gn2_w'], p['gn2_b'], p['gb2_w'], p['gb2_b'])

    w2 = p['conv2_w'].reshape(9, Cout, Cout).astype(jnp.float32)
    if 'skip_w' in p:                       # 1x1 conv skip (in_ch != out_ch)
        wsk = p['skip_w'].astype(jnp.float32)
        skb = p['skip_b'].astype(jnp.float32)
    else:                                   # nn.Identity skip (in_ch == out_ch)
        wsk = jnp.eye(Cin, dtype=jnp.float32)
        skb = jnp.zeros((1, Cout), jnp.float32)
    b2 = (p['conv2_b'] + skb).astype(jnp.float32)        # conv2 bias + skip bias fused

    out = pl.pallas_call(
        _pass2_kernel,
        grid=(N,),
        in_specs=[
            pl.BlockSpec((1, H + 2, W + 2, Cout), lambda n: (n, 0, 0, 0)),
            pl.BlockSpec((1, H, W, Cin), lambda n: (n, 0, 0, 0)),
            pl.BlockSpec((1, 2, Cout), lambda n: (n, 0, 0)),
            pl.BlockSpec((9, Cout, Cout), lambda n: (0, 0, 0)),
            pl.BlockSpec((Cin, Cout), lambda n: (0, 0)),
            pl.BlockSpec((1, Cout), lambda n: (0, 0)),
        ],
        out_specs=pl.BlockSpec((1, H, W, Cout), lambda n: (n, 0, 0, 0)),
        out_shape=jax.ShapeDtypeStruct((N, H, W, Cout), jnp.float32),
        compiler_params=cparams,
        cost_estimate=pl.CostEstimate(
            flops=2 * N * H * W * (9 * Cout + Cin) * Cout,
            transcendentals=0,
            bytes_accessed=4 * (N * (H + 2) * (W + 2) * Cout + x32.size + st2.size
                                + w2.size + wsk.size + b2.size + N * H * W * Cout)),
    )(h1p, x32, st2, w2, wsk, b2)

    return out                                  # (N, H, W, Cout) f32, unpadded


# ----------------------------------------------------------------------------- params / reference
def init_params(key, in_ch, out_ch, emb_dim):
    ks = jax.random.split(key, 14)
    f = lambda k, shape, s=0.1: (s * jax.random.normal(k, shape)).astype(jnp.float32)
    p = {}
    # BatchNorm affine params (PyTorch default init: weight=1, bias=0)
    p['bn1_w'] = jnp.ones((1, in_ch), jnp.float32)
    p['bn1_b'] = jnp.zeros((1, in_ch), jnp.float32)
    p['bn2_w'] = jnp.ones((1, out_ch), jnp.float32)
    p['bn2_b'] = jnp.zeros((1, out_ch), jnp.float32)
    # Linear layers, stored transposed as (emb_dim, ch)
    p['gn1_w'] = f(ks[0], (emb_dim, in_ch));  p['gn1_b'] = f(ks[1], (1, in_ch))
    p['gb1_w'] = f(ks[2], (emb_dim, in_ch));  p['gb1_b'] = f(ks[3], (1, in_ch))
    p['gn2_w'] = f(ks[4], (emb_dim, out_ch)); p['gn2_b'] = f(ks[5], (1, out_ch))
    p['gb2_w'] = f(ks[6], (emb_dim, out_ch)); p['gb2_b'] = f(ks[7], (1, out_ch))
    # Convs, HWIO
    p['conv1_w'] = f(ks[8], (3, 3, in_ch, out_ch));   p['conv1_b'] = f(ks[9], (1, out_ch))
    p['conv2_w'] = f(ks[10], (3, 3, out_ch, out_ch)); p['conv2_b'] = f(ks[11], (1, out_ch))
    if in_ch != out_ch:                 # PyTorch: Conv2d(in,out,1); else nn.Identity
        p['skip_w'] = f(ks[12], (in_ch, out_ch)); p['skip_b'] = f(ks[13], (1, out_ch))
    return p


def ref_forward(x, y, p):
    """Pure-JAX f32 reference (NHWC), mirroring the PyTorch forward."""
    def mod_bn(h, bnw, bnb, gnw, gnb, gbw, gbb):
        mean = jnp.mean(h, axis=(0, 1, 2), keepdims=True)
        var = jnp.mean((h - mean) ** 2, axis=(0, 1, 2), keepdims=True)
        out = (h - mean) / jnp.sqrt(var + EPS) * bnw[0] + bnb[0]
        gamma = y @ gnw + gnb[0]
        beta = y @ gbw + gbb[0]
        return gamma[:, None, None, :] * out + beta[:, None, None, :]

    def conv(h, w, b):
        o = jax.lax.conv_general_dilated(
            h, w, window_strides=(1, 1), padding='SAME',
            dimension_numbers=('NHWC', 'HWIO', 'NHWC'))
        return o + b[0]

    h = jax.nn.relu(mod_bn(x, p['bn1_w'], p['bn1_b'], p['gn1_w'], p['gn1_b'],
                           p['gb1_w'], p['gb1_b']))
    h = conv(h, p['conv1_w'], p['conv1_b'])
    h = jax.nn.relu(mod_bn(h, p['bn2_w'], p['bn2_b'], p['gn2_w'], p['gn2_b'],
                           p['gb2_w'], p['gb2_b']))
    h = conv(h, p['conv2_w'], p['conv2_b'])
    if 'skip_w' in p:
        skip = conv(x, p['skip_w'].reshape(1, 1, *p['skip_w'].shape), p['skip_b'])
    else:
        skip = x
    return h + skip


if __name__ == "__main__":
    H = W = 16
    E = 8
    key = jax.random.PRNGKey(0)

    # Two configs: 1x1-conv skip (in_ch != out_ch) and identity skip (in_ch == out_ch).
    for (N, Cin, Cout) in [(2, 4, 8), (2, 8, 8)]:
        kx, ky, kp, key = jax.random.split(key, 4)
        x_nchw = jax.random.normal(kx, (N, Cin, H, W), jnp.float32)   # PyTorch NCHW input
        y_emb = jax.random.normal(ky, (N, E), jnp.float32)
        params = init_params(kp, Cin, Cout, E)

        x_nhwc = jnp.transpose(x_nchw, (0, 2, 3, 1))                  # kernel layout
        out = jax.block_until_ready(resblockg_forward(x_nhwc, y_emb, params))

        ref = ref_forward(x_nhwc, y_emb, params)
        # All-f32 math: observed error is typically <~1e-3; tolerance kept conservative.
        np.testing.assert_allclose(np.asarray(out), np.asarray(ref), rtol=2e-2, atol=2e-2)

        # NCHW view of the result (matches the PyTorch module's output layout)
        _ = jnp.transpose(out, (0, 3, 1, 2))

    print("KERNEL_OK")
</pallas_src>

<mosaic_0001>
module attributes {stable_mosaic.version = 11 : i64} {
  func.func @_pass1_kernel(%arg0: i32, %arg1: memref<1x18x18x4xf32, #tpu.memory_space<vmem>>, %arg2: memref<1x2x4xf32, #tpu.memory_space<vmem>>, %arg3: memref<9x4x8xf32, #tpu.memory_space<vmem>>, %arg4: memref<1x8xf32, #tpu.memory_space<vmem>>, %arg5: memref<1x18x18x8xf32, #tpu.memory_space<vmem>>, %arg6: memref<1x1x8xf32, #tpu.memory_space<vmem>>, %arg7: memref<1x1x8xf32, #tpu.memory_space<vmem>>) attributes {dimension_semantics = [#tpu.dimension_semantics<parallel>], iteration_bounds = array<i64: 2>, scalar_prefetch = 0 : i64, scratch_operands = 0 : i64, tpu.core_type = #tpu.core_type<tc>, window_params = [{transform_indices = @transform_0, window_bounds = array<i64: 1, 18, 18, 4>}, {transform_indices = @transform_1, window_bounds = array<i64: 1, 2, 4>}, {pipeline_mode = #tpu.pipeline_mode<synchronous>, transform_indices = @transform_2, window_bounds = array<i64: 9, 4, 8>}, {pipeline_mode = #tpu.pipeline_mode<synchronous>, transform_indices = @transform_3, window_bounds = array<i64: 1, 8>}, {transform_indices = @transform_4, window_bounds = array<i64: 1, 18, 18, 8>}, {transform_indices = @transform_5, window_bounds = array<i64: 1, 1, 8>}, {transform_indices = @transform_6, window_bounds = array<i64: 1, 1, 8>}]} {
    %c0 = arith.constant 0 : index
    %c0_0 = arith.constant 0 : index
    %c0_1 = arith.constant 0 : index
    %c0_2 = arith.constant 0 : index
    %0 = vector.load %arg1[%c0, %c0_0, %c0_1, %c0_2] : memref<1x18x18x4xf32, #tpu.memory_space<vmem>>, vector<1x18x18x4xf32>
    %1 = vector.shape_cast %0 : vector<1x18x18x4xf32> to vector<18x18x4xf32>
    %c0_3 = arith.constant 0 : index
    %c0_4 = arith.constant 0 : index
    %c0_5 = arith.constant 0 : index
    %2 = vector.load %arg2[%c0_3, %c0_4, %c0_5] : memref<1x2x4xf32, #tpu.memory_space<vmem>>, vector<1x1x4xf32>
    %3 = vector.shape_cast %2 : vector<1x1x4xf32> to vector<1x4xf32>
    %c0_6 = arith.constant 0 : index
    %c1 = arith.constant 1 : index
    %c0_7 = arith.constant 0 : index
    %4 = vector.load %arg2[%c0_6, %c1, %c0_7] : memref<1x2x4xf32, #tpu.memory_space<vmem>>, vector<1x1x4xf32>
    %5 = vector.shape_cast %4 : vector<1x1x4xf32> to vector<1x4xf32>
    %6 = vector.shape_cast %3 : vector<1x4xf32> to vector<1x1x4xf32>
    %7 = vector.broadcast %6 : vector<1x1x4xf32> to vector<18x18x4xf32>
    %8 = arith.mulf %1, %7 : vector<18x18x4xf32>
    %9 = vector.shape_cast %5 : vector<1x4xf32> to vector<1x1x4xf32>
    %10 = vector.broadcast %9 : vector<1x1x4xf32> to vector<18x18x4xf32>
    %11 = arith.addf %8, %10 : vector<18x18x4xf32>
    %cst = arith.constant 0.000000e+00 : f32
    %12 = vector.broadcast %cst : f32 to vector<18x18x4xf32>
    %13 = arith.maximumf %11, %12 : vector<18x18x4xf32>
    %14 = tpu.iota {dimensions = array<i32: 0>} : vector<18x18x1xi32>
    %15 = tpu.iota {dimensions = array<i32: 1>} : vector<18x18x1xi32>
    %c1_i32 = arith.constant 1 : i32
    %16 = vector.broadcast %c1_i32 : i32 to vector<18x18x1xi32>
    %17 = arith.cmpi sge, %14, %16 : vector<18x18x1xi32>
    %c16_i32 = arith.constant 16 : i32
    %18 = vector.broadcast %c16_i32 : i32 to vector<18x18x1xi32>
    %19 = arith.cmpi sle, %14, %18 : vector<18x18x1xi32>
    %20 = arith.andi %17, %19 : vector<18x18x1xi1>
    %c1_i32_8 = arith.constant 1 : i32
    %21 = vector.broadcast %c1_i32_8 : i32 to vector<18x18x1xi32>
    %22 = arith.cmpi sge, %15, %21 : vector<18x18x1xi32>
    %23 = arith.andi %20, %22 : vector<18x18x1xi1>
    %c16_i32_9 = arith.constant 16 : i32
    %24 = vector.broadcast %c16_i32_9 : i32 to vector<18x18x1xi32>
    %25 = arith.cmpi sle, %15, %24 : vector<18x18x1xi32>
    %26 = arith.andi %23, %25 : vector<18x18x1xi1>
    %cst_10 = arith.constant 0.000000e+00 : f32
    %27 = vector.shape_cast %26 : vector<18x18x1xi1> to vector<18x18x1xi1>
    %28 = vector.broadcast %27 : vector<18x18x1xi1> to vector<18x18x4xi1>
    %29 = vector.broadcast %cst_10 : f32 to vector<18x18x4xf32>
    %30 = arith.select %28, %13, %29 : vector<18x18x4xi1>, vector<18x18x4xf32>
    %cst_11 = arith.constant 0.000000e+00 : f32
    %31 = vector.broadcast %cst_11 : f32 to vector<256x8xf32>
    %32 = vector.extract_strided_slice %30 {offsets = [0, 0, 0], sizes = [16, 16, 4], strides = [1, 1, 1]} : vector<18x18x4xf32> to vector<16x16x4xf32>
    %33 = vector.shape_cast %32 : vector<16x16x4xf32> to vector<256x4xf32>
    %c0_12 = arith.constant 0 : index
    %c0_13 = arith.constant 0 : index
    %c0_14 = arith.constant 0 : index
    %34 = vector.load %arg3[%c0_12, %c0_13, %c0_14] : memref<9x4x8xf32, #tpu.memory_space<vmem>>, vector<1x4x8xf32>
    %35 = vector.shape_cast %34 : vector<1x4x8xf32> to vector<4x8xf32>
    %cst_15 = arith.constant dense<0.000000e+00> : vector<256x8xf32>
    %36 = tpu.matmul %33, %35, %cst_15 {dimension_numbers = #tpu.dot_dimension_numbers<[1], [0], [0], [1], [0, 0, 1, 1], [], []>} : vector<256x4xf32>, vector<4x8xf32>, vector<256x8xf32> -> vector<256x8xf32>
    %37 = arith.addf %31, %36 : vector<256x8xf32>
    %38 = vector.extract_strided_slice %30 {offsets = [0, 1, 0], sizes = [16, 16, 4], strides = [1, 1, 1]} : vector<18x18x4xf32> to vector<16x16x4xf32>
    %39 = vector.shape_cast %38 : vector<16x16x4xf32> to vector<256x4xf32>
    %c1_16 = arith.constant 1 : index
    %c0_17 = arith.constant 0 : index
    %c0_18 = arith.constant 0 : index
    %40 = vector.load %arg3[%c1_16, %c0_17, %c0_18] : memref<9x4x8xf32, #tpu.memory_space<vmem>>, vector<1x4x8xf32>
    %41 = vector.shape_cast %40 : vector<1x4x8xf32> to vector<4x8xf32>
    %cst_19 = arith.constant dense<0.000000e+00> : vector<256x8xf32>
    %42 = tpu.matmul %39, %41, %cst_19 {dimension_numbers = #tpu.dot_dimension_numbers<[1], [0], [0], [1], [0, 0, 1, 1], [], []>} : vector<256x4xf32>, vector<4x8xf32>, vector<256x8xf32> -> vector<256x8xf32>
    %43 = arith.addf %37, %42 : vector<256x8xf32>
    %44 = vector.extract_strided_slice %30 {offsets = [0, 2, 0], sizes = [16, 16, 4], strides = [1, 1, 1]} : vector<18x18x4xf32> to vector<16x16x4xf32>
    %45 = vector.shape_cast %44 : vector<16x16x4xf32> to vector<256x4xf32>
    %c2 = arith.constant 2 : index
    %c0_20 = arith.constant 0 : index
    %c0_21 = arith.constant 0 : index
    %46 = vector.load %arg3[%c2, %c0_20, %c0_21] : memref<9x4x8xf32, #tpu.memory_space<vmem>>, vector<1x4x8xf32>
    %47 = vector.shape_cast %46 : vector<1x4x8xf32> to vector<4x8xf32>
    %cst_22 = arith.constant dense<0.000000e+00> : vector<256x8xf32>
    %48 = tpu.matmul %45, %47, %cst_22 {dimension_numbers = #tpu.dot_dimension_numbers<[1], [0], [0], [1], [0, 0, 1, 1], [], []>} : vector<256x4xf32>, vector<4x8xf32>, vector<256x8xf32> -> vector<256x8xf32>
    %49 = arith.addf %43, %48 : vector<256x8xf32>
    %50 = vector.extract_strided_slice %30 {offsets = [1, 0, 0], sizes = [16, 16, 4], strides = [1, 1, 1]} : vector<18x18x4xf32> to vector<16x16x4xf32>
    %51 = vector.shape_cast %50 : vector<16x16x4xf32> to vector<256x4xf32>
    %c3 = arith.constant 3 : index
    %c0_23 = arith.constant 0 : index
    %c0_24 = arith.constant 0 : index
    %52 = vector.load %arg3[%c3, %c0_23, %c0_24] : memref<9x4x8xf32, #tpu.memory_space<vmem>>, vector<1x4x8xf32>
    %53 = vector.shape_cast %52 : vector<1x4x8xf32> to vector<4x8xf32>
    %cst_25 = arith.constant dense<0.000000e+00> : vector<256x8xf32>
    %54 = tpu.matmul %51, %53, %cst_25 {dimension_numbers = #tpu.dot_dimension_numbers<[1], [0], [0], [1], [0, 0, 1, 1], [], []>} : vector<256x4xf32>, vector<4x8xf32>, vector<256x8xf32> -> vector<256x8xf32>
    %55 = arith.addf %49, %54 : vector<256x8xf32>
    %56 = vector.extract_strided_slice %30 {offsets = [1, 1, 0], sizes = [16, 16, 4], strides = [1, 1, 1]} : vector<18x18x4xf32> to vector<16x16x4xf32>
    %57 = vector.shape_cast %56 : vector<16x16x4xf32> to vector<256x4xf32>
    %c4 = arith.constant 4 : index
    %c0_26 = arith.constant 0 : index
    %c0_27 = arith.constant 0 : index
    %58 = vector.load %arg3[%c4, %c0_26, %c0_27] : memref<9x4x8xf32, #tpu.memory_space<vmem>>, vector<1x4x8xf32>
    %59 = vector.shape_cast %58 : vector<1x4x8xf32> to vector<4x8xf32>
    %cst_28 = arith.constant dense<0.000000e+00> : vector<256x8xf32>
    %60 = tpu.matmul %57, %59, %cst_28 {dimension_numbers = #tpu.dot_dimension_numbers<[1], [0], [0], [1], [0, 0, 1, 1], [], []>} : vector<256x4xf32>, vector<4x8xf32>, vector<256x8xf32> -> vector<256x8xf32>
    %61 = arith.addf %55, %60 : vector<256x8xf32>
    %62 = vector.extract_strided_slice %30 {offsets = [1, 2, 0], sizes = [16, 16, 4], strides = [1, 1, 1]} : vector<18x18x4xf32> to vector<16x16x4xf32>
    %63 = vector.shape_cast %62 : vector<16x16x4xf32> to vector<256x4xf32>
    %c5 = arith.constant 5 : index
    %c0_29 = arith.constant 0 : index
    %c0_30 = arith.constant 0 : index
    %64 = vector.load %arg3[%c5, %c0_29, %c0_30] : memref<9x4x8xf32, #tpu.memory_space<vmem>>, vector<1x4x8xf32>
    %65 = vector.shape_cast %64 : vector<1x4x8xf32> to vector<4x8xf32>
    %cst_31 = arith.constant dense<0.000000e+00> : vector<256x8xf32>
    %66 = tpu.matmul %63, %65, %cst_31 {dimension_numbers = #tpu.dot_dimension_numbers<[1], [0], [0], [1], [0, 0, 1, 1], [], []>} : vector<256x4xf32>, vector<4x8xf32>, vector<256x8xf32> -> vector<256x8xf32>
    %67 = arith.addf %61, %66 : vector<256x8xf32>
    %68 = vector.extract_strided_slice %30 {offsets = [2, 0, 0], sizes = [16, 16, 4], strides = [1, 1, 1]} : vector<18x18x4xf32> to vector<16x16x4xf32>
    %69 = vector.shape_cast %68 : vector<16x16x4xf32> to vector<256x4xf32>
    %c6 = arith.constant 6 : index
    %c0_32 = arith.constant 0 : index
    %c0_33 = arith.constant 0 : index
    %70 = vector.load %arg3[%c6, %c0_32, %c0_33] : memref<9x4x8xf32, #tpu.memory_space<vmem>>, vector<1x4x8xf32>
    %71 = vector.shape_cast %70 : vector<1x4x8xf32> to vector<4x8xf32>
    %cst_34 = arith.constant dense<0.000000e+00> : vector<256x8xf32>
    %72 = tpu.matmul %69, %71, %cst_34 {dimension_numbers = #tpu.dot_dimension_numbers<[1], [0], [0], [1], [0, 0, 1, 1], [], []>} : vector<256x4xf32>, vector<4x8xf32>, vector<256x8xf32> -> vector<256x8xf32>
    %73 = arith.addf %67, %72 : vector<256x8xf32>
    %74 = vector.extract_strided_slice %30 {offsets = [2, 1, 0], sizes = [16, 16, 4], strides = [1, 1, 1]} : vector<18x18x4xf32> to vector<16x16x4xf32>
    %75 = vector.shape_cast %74 : vector<16x16x4xf32> to vector<256x4xf32>
    %c7 = arith.constant 7 : index
    %c0_35 = arith.constant 0 : index
    %c0_36 = arith.constant 0 : index
    %76 = vector.load %arg3[%c7, %c0_35, %c0_36] : memref<9x4x8xf32, #tpu.memory_space<vmem>>, vector<1x4x8xf32>
    %77 = vector.shape_cast %76 : vector<1x4x8xf32> to vector<4x8xf32>
    %cst_37 = arith.constant dense<0.000000e+00> : vector<256x8xf32>
    %78 = tpu.matmul %75, %77, %cst_37 {dimension_numbers = #tpu.dot_dimension_numbers<[1], [0], [0], [1], [0, 0, 1, 1], [], []>} : vector<256x4xf32>, vector<4x8xf32>, vector<256x8xf32> -> vector<256x8xf32>
    %79 = arith.addf %73, %78 : vector<256x8xf32>
    %80 = vector.extract_strided_slice %30 {offsets = [2, 2, 0], sizes = [16, 16, 4], strides = [1, 1, 1]} : vector<18x18x4xf32> to vector<16x16x4xf32>
    %81 = vector.shape_cast %80 : vector<16x16x4xf32> to vector<256x4xf32>
    %c8 = arith.constant 8 : index
    %c0_38 = arith.constant 0 : index
    %c0_39 = arith.constant 0 : index
    %82 = vector.load %arg3[%c8, %c0_38, %c0_39] : memref<9x4x8xf32, #tpu.memory_space<vmem>>, vector<1x4x8xf32>
    %83 = vector.shape_cast %82 : vector<1x4x8xf32> to vector<4x8xf32>
    %cst_40 = arith.constant dense<0.000000e+00> : vector<256x8xf32>
    %84 = tpu.matmul %81, %83, %cst_40 {dimension_numbers = #tpu.dot_dimension_numbers<[1], [0], [0], [1], [0, 0, 1, 1], [], []>} : vector<256x4xf32>, vector<4x8xf32>, vector<256x8xf32> -> vector<256x8xf32>
    %85 = arith.addf %79, %84 : vector<256x8xf32>
    %c0_41 = arith.constant 0 : index
    %c0_42 = arith.constant 0 : index
    %86 = vector.load %arg4[%c0_41, %c0_42] : memref<1x8xf32, #tpu.memory_space<vmem>>, vector<1x8xf32>
    %87 = vector.broadcast %86 : vector<1x8xf32> to vector<256x8xf32>
    %88 = arith.addf %85, %87 : vector<256x8xf32>
    %cst_43 = arith.constant dense<0.000000e+00> : vector<8xf32>
    %89 = vector.multi_reduction <add>, %88, %cst_43 [0] : vector<256x8xf32> to vector<8xf32>
    %90 = vector.shape_cast %89 : vector<8xf32> to vector<1x8xf32>
    %c0_44 = arith.constant 0 : index
    %c0_45 = arith.constant 0 : index
    %c0_46 = arith.constant 0 : index
    %91 = vector.load %arg6[%c0_44, %c0_45, %c0_46] : memref<1x1x8xf32, #tpu.memory_space<vmem>>, vector<1x1x8xf32>
    %92 = vector.shape_cast %91 : vector<1x1x8xf32> to vector<1x8xf32>
    %93 = vector.shape_cast %90 : vector<1x8xf32> to vector<1x1x8xf32>
    tpu.vector_store %arg6[%c0_44, %c0_45, %c0_46], %93 {strides = array<i32>} : memref<1x1x8xf32, #tpu.memory_space<vmem>>, vector<1x1x8xf32>,
    %94 = arith.mulf %88, %88 : vector<256x8xf32>
    %cst_47 = arith.constant dense<0.000000e+00> : vector<8xf32>
    %95 = vector.multi_reduction <add>, %94, %cst_47 [0] : vector<256x8xf32> to vector<8xf32>
    %96 = vector.shape_cast %95 : vector<8xf32> to vector<1x8xf32>
    %c0_48 = arith.constant 0 : index
    %c0_49 = arith.constant 0 : index
    %c0_50 = arith.constant 0 : index
    %97 = vector.load %arg7[%c0_48, %c0_49, %c0_50] : memref<1x1x8xf32, #tpu.memory_space<vmem>>, vector<1x1x8xf32>
    %98 = vector.shape_cast %97 : vector<1x1x8xf32> to vector<1x8xf32>
    %99 = vector.shape_cast %96 : vector<1x8xf32> to vector<1x1x8xf32>
    tpu.vector_store %arg7[%c0_48, %c0_49, %c0_50], %99 {strides = array<i32>} : memref<1x1x8xf32, #tpu.memory_space<vmem>>, vector<1x1x8xf32>,
    %100 = vector.shape_cast %88 : vector<256x8xf32> to vector<16x16x8xf32>
    %c0_51 = arith.constant 0 : index
    %c1_52 = arith.constant 1 : index
    %c1_53 = arith.constant 1 : index
    %c0_54 = arith.constant 0 : index
    %101 = vector.load %arg5[%c0_51, %c1_52, %c1_53, %c0_54] : memref<1x18x18x8xf32, #tpu.memory_space<vmem>>, vector<1x16x16x8xf32>
    %102 = vector.shape_cast %101 : vector<1x16x16x8xf32> to vector<16x16x8xf32>
    %103 = vector.shape_cast %100 : vector<16x16x8xf32> to vector<1x16x16x8xf32>
    tpu.vector_store %arg5[%c0_51, %c1_52, %c1_53, %c0_54], %103 {strides = array<i32>} : memref<1x18x18x8xf32, #tpu.memory_space<vmem>>, vector<1x16x16x8xf32>,
    return
  }
  func.func @transform_0(%arg0: i32) -> (i32, i32, i32, i32) {
    %c0_i32 = arith.constant 0 : i32
    %c0_i32_0 = arith.constant 0 : i32
    %c0_i32_1 = arith.constant 0 : i32
    %c0_i32_2 = arith.constant 0 : i32
    return %arg0, %c0_i32, %c0_i32_0, %c0_i32_1 : i32, i32, i32, i32
  }
  func.func @transform_1(%arg0: i32) -> (i32, i32, i32) {
    %c0_i32 = arith.constant 0 : i32
    %c0_i32_0 = arith.constant 0 : i32
    %c0_i32_1 = arith.constant 0 : i32
    return %arg0, %c0_i32, %c0_i32_0 : i32, i32, i32
  }
  func.func @transform_2(%arg0: i32) -> (i32, i32, i32) {
    %c0_i32 = arith.constant 0 : i32
    %c0_i32_0 = arith.constant 0 : i32
    %c0_i32_1 = arith.constant 0 : i32
    %c0_i32_2 = arith.constant 0 : i32
    return %c0_i32, %c0_i32_0, %c0_i32_1 : i32, i32, i32
  }
  func.func @transform_3(%arg0: i32) -> (i32, i32) {
    %c0_i32 = arith.constant 0 : i32
    %c0_i32_0 = arith.constant 0 : i32
    %c0_i32_1 = arith.constant 0 : i32
    return %c0_i32, %c0_i32_0 : i32, i32
  }
  func.func @transform_4(%arg0: i32) -> (i32, i32, i32, i32) {
    %c0_i32 = arith.constant 0 : i32
    %c0_i32_0 = arith.constant 0 : i32
    %c0_i32_1 = arith.constant 0 : i32
    %c0_i32_2 = arith.constant 0 : i32
    return %arg0, %c0_i32, %c0_i32_0, %c0_i32_1 : i32, i32, i32, i32
  }
  func.func @transform_5(%arg0: i32) -> (i32, i32, i32) {
    %c0_i32 = arith.constant 0 : i32
    %c0_i32_0 = arith.constant 0 : i32
    %c0_i32_1 = arith.constant 0 : i32
    return %arg0, %c0_i32, %c0_i32_0 : i32, i32, i32
  }
  func.func @transform_6(%arg0: i32) -> (i32, i32, i32) {
    %c0_i32 = arith.constant 0 : i32
    %c0_i32_0 = arith.constant 0 : i32
    %c0_i32_1 = arith.constant 0 : i32
    return %arg0, %c0_i32, %c0_i32_0 : i32, i32, i32
  }
}

</mosaic_0001>

<llo_original>
// kernel: tpu_custom_call.1
$region0: #{tpu_custom_call.1}
  #allocation0 [shape = 'u32[]', space=smem, size = 0x4, offset = 0x4, fixed_abs, tag = 'smem constant byte address 0x4 - core index']
  #allocation1 [shape = 'u32[72,128]{1,0:T(1,128)}', space=vmem, size = 0x9000, scoped, tag = 'internal scratch']
  %s0 = inlined_call_operand.vmem [shape: f32[2,18,18,4], index: 0, kind: input, shape index: {}]
  %s1 = inlined_call_operand.vmem [shape: f32[2,2,4], index: 1, kind: input, shape index: {}]
  %s2 = inlined_call_operand.vmem [shape: f32[9,4,8], index: 2, kind: input, shape index: {}]
  %s3 = inlined_call_operand.vmem [shape: f32[1,8], index: 3, kind: input, shape index: {}]
  %s4 = inlined_call_operand.vmem [shape: f32[2,18,18,8], index: 4, kind: output, shape index: {0}]
  %s5 = inlined_call_operand.hbm [shape: f32[2,1,8], index: 5, kind: output, shape index: {1}]
  %s6 = inlined_call_operand.hbm [shape: f32[2,1,8], index: 6, kind: output, shape index: {2}]
  %7 = xla_tuple %s4, %s5, %s6
  %s8 = sld [smem:[#allocation0]]
  $region65: #{tpu_custom_call.1} parent=0
    _
  %s10 = ssub.s32 1, %s8
  %s11 = scalar_select 0, %s10, %s8
  $region1: #{tpu_custom_call.1} parent=0
    #allocation2 [shape = 'u8[1024]{0}', space=vmem, size = 0x400, scoped, tag = 'output window, operand 1']
    #allocation3 [shape = 's32[2]{0}', space=sflag, size = 0x8, scoped, tag = 'scoped memory for tpu_custom_call.1']
    #allocation4 [shape = 'u8[1024]{0}', space=vmem, size = 0x400, scoped, tag = 'output window, operand 2']
    #allocation5 [shape = 's32[2]{0}', space=sflag, size = 0x8, scoped, tag = 'scoped memory for tpu_custom_call.1']
    %12 = vsyncpa [#allocation3], 0
    %s13 = scalar_lea.sflag [#allocation3], 1
    %14 = vsyncpa %s13, 0
    %15 = vsyncpa [#allocation5], 0
    %s16 = scalar_lea.sflag [#allocation5], 1
    %17 = vsyncpa %s16, 0
    loop: start=0, step=1, limit=4
    $region2: #{tpu_custom_call.1} parent=1 // loop_pre_header
      _
    $region3: #{tpu_custom_call.1} parent=1 // loop_header
      %s19 = sphi 0, %s23
      %p20 = scmp.ge.s32.totalorder %s19, 4
      %s29 = sphi 0, %s31
      %s32 = sphi 0, %s29
      %s33 = sphi 0, %s32
      %s49 = sphi 0, %s33
      %s55 = sphi 0, %s57
      %s58 = sphi 0, %s55
      %s59 = sphi 0, %s58
      %s75 = sphi 0, %s59
      %s79 = sphi 0, %s79
      %s81 = sphi 0, %s79
      %s82 = sphi 0, %s81
      %s96 = sphi 0, %s82
      %s100 = sphi 0, %s100
      %s102 = sphi 0, %s100
      %s103 = sphi 0, %s102
      %s117 = sphi 0, %s103
      %s123 = sphi 0, %s125
      %s126 = sphi 0, %s123
      %s127 = sphi 0, %s126
      %s143 = sphi 0, %s127
      %s149 = sphi 0, %s151
      %s152 = sphi 0, %s149
      %s153 = sphi 0, %s152
      %s169 = sphi 0, %s153
      %s175 = sphi 0, %s177
      %s178 = sphi 0, %s175
      %s179 = sphi 0, %s178
      %s195 = sphi 0, %s179
    $region4: #{tpu_custom_call.1} parent=1 // loop_header_branch
      %22 = sbr.rel (%p20) target = $region8
    $region5: #{tpu_custom_call.1} parent=1 // loop_body
      %s24 = ssub.s32 %s19, 1
      %s25 = ssub.s32 %s19, 2
      %s26 = sadd.s32 %s19, 1
      %s27 = ssub.s32 %s19, %s26
      %p28 = scmp.eq.s32.totalorder %s27, 0
      %s30 = sadd.s32 %s29, 1
      %s31 = scalar_select %p28, %s29, %s30
      %p34 = pneg %p28
      %p35 = scmp.eq.s32.totalorder %s19, 1
      %p36 = por %p34, %p35
      %p37 = scmp.ne.s32.totalorder %s29, %s32
      %p38 = scmp.eq.s32.totalorder %s19, 0
      %p39 = por %p37, %p38
      %p40 = scmp.ne.s32.totalorder %s29, %s32
      %p41 = scmp.eq.s32.totalorder %s24, 1
      %p42 = por %p40, %p41
      %p43 = scmp.ne.s32.totalorder %s32, %s33
      %p44 = scmp.eq.s32.totalorder %s24, 0
      %p45 = por %p43, %p44
      %p46 = scmp.ne.s32.totalorder %s32, %s33
      %p47 = scmp.eq.s32.totalorder %s25, 1
      %p48 = por %p46, %p47
      %p50 = scmp.ne.s32.totalorder %s33, %s49
      %p51 = scmp.eq.s32.totalorder %s25, 0
      %p52 = por %p50, %p51
      %s53 = ssub.s32 %s19, %s26
      %p54 = scmp.eq.s32.totalorder %s53, 0
      %s56 = sadd.s32 %s55, 1
      %s57 = scalar_select %p54, %s55, %s56
      %p60 = pneg %p54
      %p61 = scmp.eq.s32.totalorder %s19, 1
      %p62 = por %p60, %p61
      %p63 = scmp.ne.s32.totalorder %s55, %s58
      %p64 = scmp.eq.s32.totalorder %s19, 0
      %p65 = por %p63, %p64
      %p66 = scmp.ne.s32.totalorder %s55, %s58
      %p67 = scmp.eq.s32.totalorder %s24, 1
      %p68 = por %p66, %p67
      %p69 = scmp.ne.s32.totalorder %s58, %s59
      %p70 = scmp.eq.s32.totalorder %s24, 0
      %p71 = por %p69, %p70
      %p72 = scmp.ne.s32.totalorder %s58, %s59
      %p73 = scmp.eq.s32.totalorder %s25, 1
      %p74 = por %p72, %p73
      %p76 = scmp.ne.s32.totalorder %s59, %s75
      %p77 = scmp.eq.s32.totalorder %s25, 0
      %p78 = por %p76, %p77
      %s80 = sadd.s32 %s79, 1
      %p83 = scmp.eq.s32.totalorder %s19, 1
      %p84 = scmp.ne.s32.totalorder %s79, %s81
      %p85 = scmp.eq.s32.totalorder %s19, 0
      %p86 = por %p84, %p85
      %p87 = scmp.ne.s32.totalorder %s79, %s81
      %p88 = scmp.eq.s32.totalorder %s24, 1
      %p89 = por %p87, %p88
      %p90 = scmp.ne.s32.totalorder %s81, %s82
      %p91 = scmp.eq.s32.totalorder %s24, 0
      %p92 = por %p90, %p91
      %p93 = scmp.ne.s32.totalorder %s81, %s82
      %p94 = scmp.eq.s32.totalorder %s25, 1
      %p95 = por %p93, %p94
      %p97 = scmp.ne.s32.totalorder %s82, %s96
      %p98 = scmp.eq.s32.totalorder %s25, 0
      %p99 = por %p97, %p98
      %s101 = sadd.s32 %s100, 1
      %p104 = scmp.eq.s32.totalorder %s19, 1
      %p105 = scmp.ne.s32.totalorder %s100, %s102
      %p106 = scmp.eq.s32.totalorder %s19, 0
      %p107 = por %p105, %p106
      %p108 = scmp.ne.s32.totalorder %s100, %s102
      %p109 = scmp.eq.s32.totalorder %s24, 1
      %p110 = por %p108, %p109
      %p111 = scmp.ne.s32.totalorder %s102, %s103
      %p112 = scmp.eq.s32.totalorder %s24, 0
      %p113 = por %p111, %p112
      %p114 = scmp.ne.s32.totalorder %s102, %s103
      %p115 = scmp.eq.s32.totalorder %s25, 1
      %p116 = por %p114, %p115
      %p118 = scmp.ne.s32.totalorder %s103, %s117
      %p119 = scmp.eq.s32.totalorder %s25, 0
      %p120 = por %p118, %p119
      %s121 = ssub.s32 %s19, %s26
      %p122 = scmp.eq.s32.totalorder %s121, 0
      %s124 = sadd.s32 %s123, 1
      %s125 = scalar_select %p122, %s123, %s124
      %p128 = pneg %p122
      %p129 = scmp.eq.s32.totalorder %s19, 1
      %p130 = por %p128, %p129
      %p131 = scmp.ne.s32.totalorder %s123, %s126
      %p132 = scmp.eq.s32.totalorder %s19, 0
      %p133 = por %p131, %p132
      %p134 = scmp.ne.s32.totalorder %s123, %s126
      %p135 = scmp.eq.s32.totalorder %s24, 1
      %p136 = por %p134, %p135
      %p137 = scmp.ne.s32.totalorder %s126, %s127
      %p138 = scmp.eq.s32.totalorder %s24, 0
      %p139 = por %p137, %p138
      %p140 = scmp.ne.s32.totalorder %s126, %s127
      %p141 = scmp.eq.s32.totalorder %s25, 1
      %p142 = por %p140, %p141
      %p144 = scmp.ne.s32.totalorder %s127, %s143
      %p145 = scmp.eq.s32.totalorder %s25, 0
      %p146 = por %p144, %p145
      %s147 = ssub.s32 %s19, %s26
      %p148 = scmp.eq.s32.totalorder %s147, 0
      %s150 = sadd.s32 %s149, 1
      %s151 = scalar_select %p148, %s149, %s150
      %p154 = pneg %p148
      %p155 = scmp.eq.s32.totalorder %s19, 1
      %p156 = por %p154, %p155
      %p157 = scmp.ne.s32.totalorder %s149, %s152
      %p158 = scmp.eq.s32.totalorder %s19, 0
      %p159 = por %p157, %p158
      %p160 = scmp.ne.s32.totalorder %s149, %s152
      %p161 = scmp.eq.s32.totalorder %s24, 1
      %p162 = por %p160, %p161
      %p163 = scmp.ne.s32.totalorder %s152, %s153
      %p164 = scmp.eq.s32.totalorder %s24, 0
      %p165 = por %p163, %p164
      %p166 = scmp.ne.s32.totalorder %s152, %s153
      %p167 = scmp.eq.s32.totalorder %s25, 1
      %p168 = por %p166, %p167
      %p170 = scmp.ne.s32.totalorder %s153, %s169
      %p171 = scmp.eq.s32.totalorder %s25, 0
      %p172 = por %p170, %p171
      %s173 = ssub.s32 %s19, %s26
      %p174 = scmp.eq.s32.totalorder %s173, 0
      %s176 = sadd.s32 %s175, 1
      %s177 = scalar_select %p174, %s175, %s176
      %p180 = pneg %p174
      %p181 = scmp.eq.s32.totalorder %s19, 1
      %p182 = por %p180, %p181
      %p183 = scmp.ne.s32.totalorder %s175, %s178
      %p184 = scmp.eq.s32.totalorder %s19, 0
      %p185 = por %p183, %p184
      %p186 = scmp.ne.s32.totalorder %s175, %s178
      %p187 = scmp.eq.s32.totalorder %s24, 1
      %p188 = por %p186, %p187
      %p189 = scmp.ne.s32.totalorder %s178, %s179
      %p190 = scmp.eq.s32.totalorder %s24, 0
      %p191 = por %p189, %p190
      %p192 = scmp.ne.s32.totalorder %s178, %s179
      %p193 = scmp.eq.s32.totalorder %s25, 1
      %p194 = por %p192, %p193
      %p196 = scmp.ne.s32.totalorder %s179, %s195
      %p197 = scmp.eq.s32.totalorder %s25, 0
      %p198 = por %p196, %p197
      %p199 = scmp.le.s32.totalorder 1, %s19
      %p200 = scmp.lt.s32.totalorder %s19, 3
      %p201 = pnand %p199, %p200
      %p202 = pneg %p201
      // Predicated region
      $region9: #{tpu_custom_call.1} parent=5 // pred_check
        _
      $region10: #{tpu_custom_call.1} parent=5 // pred_check_branch
        %204 = sbr.rel (%p201) target = $region12
      $region11: #{tpu_custom_call.1} parent=5 // pred_region
        %s205 = ssub.s32 %s19, 1
        // Predicated region
        $region13: #{tpu_custom_call.1} parent=11 // pred_check
          %p206 = pneg %p92
        $region14: #{tpu_custom_call.1} parent=11 // pred_check_branch
          %208 = sbr.rel (%p206) target = $region16
        $region15: #{tpu_custom_call.1} parent=11 // pred_region
          _
        $region16: #{tpu_custom_call.1} parent=11 // pred_fallthru
          _
        // Predicated region
        $region17: #{tpu_custom_call.1} parent=11 // pred_check
          %p209 = pneg %p113
        $region18: #{tpu_custom_call.1} parent=11 // pred_check_branch
          %211 = sbr.rel (%p209) target = $region20
        $region19: #{tpu_custom_call.1} parent=11 // pred_region
          _
        $region20: #{tpu_custom_call.1} parent=11 // pred_fallthru
          _
      $region12: #{tpu_custom_call.1} parent=5 // pred_fallthru
        _
      %p212 = scmp.lt.s32.totalorder %s19, 2
      // Predicated region
      $region21: #{tpu_custom_call.1} parent=5 // pred_check
        %p213 = pneg %p212
      $region22: #{tpu_custom_call.1} parent=5 // pred_check_branch
        %215 = sbr.rel (%p213) target = $region24
      $region23: #{tpu_custom_call.1} parent=5 // pred_region
        // Predicated region
        $region25: #{tpu_custom_call.1} parent=23 // pred_check
          %p216 = pneg %p39
        $region26: #{tpu_custom_call.1} parent=23 // pred_check_branch
          %218 = sbr.rel (%p216) target = $region28
        $region27: #{tpu_custom_call.1} parent=23 // pred_region
          %p219 = scmp.lt.s32.totalorder %s19, 1
          %s220 = scalar_select %p219, %s19, 1
          %s221 = smul.addr %s220, 54
          %s222 = smul.addr %s221, 8
          %s223 = scalar_lea.vmem %s0, %s222
        $region28: #{tpu_custom_call.1} parent=23 // pred_fallthru
          _
        // Predicated region
        $region29: #{tpu_custom_call.1} parent=23 // pred_check
          %p224 = pneg %p65
        $region30: #{tpu_custom_call.1} parent=23 // pred_check_branch
          %226 = sbr.rel (%p224) target = $region32
        $region31: #{tpu_custom_call.1} parent=23 // pred_region
          %p227 = scmp.lt.s32.totalorder %s19, 1
          %s228 = scalar_select %p227, %s19, 1
          %s229 = smul.addr %s228, 2
          %s230 = scalar_lea.vmem %s1, %s229
        $region32: #{tpu_custom_call.1} parent=23 // pred_fallthru
          _
      $region24: #{tpu_custom_call.1} parent=5 // pred_fallthru
        _
      %p231 = scmp.le.s32.totalorder 1, %s19
      %p232 = scmp.lt.s32.totalorder %s19, 3
      %p233 = pnand %p231, %p232
      %p234 = pneg %p233
      // Predicated region
      $region33: #{tpu_custom_call.1} parent=5 // pred_check
        _
      $region34: #{tpu_custom_call.1} parent=5 // pred_check_branch
        %236 = sbr.rel (%p233) target = $region36
      $region35: #{tpu_custom_call.1} parent=5 // pred_region
        %s237 = ssub.s32 %s19, 1
        %p238 = scmp.lt.s32.totalorder %s24, 1
        %s239 = scalar_select %p238, %s24, 1
        %s240 = smul.addr %s239, 54
        %s241 = smul.addr %s240, 8
        %s242 = scalar_lea.vmem %s0, %s241
        %p243 = pneg %p45
        %p244 = pneg %p42
        %p245 = scmp.lt.s32.totalorder %s24, 1
        %s246 = scalar_select %p245, %s24, 1
        %s247 = smul.addr %s246, 2
        %s248 = scalar_lea.vmem %s1, %s247
        %p249 = pneg %p71
        %p250 = pneg %p68
        %p251 = pneg %p92
        %p252 = pneg %p89
        %p253 = pneg %p113
        %p254 = pneg %p110
        %p255 = pneg %p139
        %p256 = pneg %p136
        %p257 = scmp.lt.s32.totalorder %s24, 1
        %s258 = scalar_select %p257, %s24, 1
        %s259 = smul.addr %s258, 54
        %s260 = smul.addr %s259, 8
        %s261 = scalar_lea.vmem %s4, %s260
        %p262 = pneg %p165
        %p263 = pneg %p162
        %s264 = sand.u32 %s152, 1
        %s265 = scalar_lea.sflag [#allocation3], %s264
        %s266 = sand.u32 %s152, 1
        %s267 = scalar_lea.vmem [#allocation2], %s266
        %p268 = pneg %p191
        %p269 = pneg %p188
        %s270 = sand.u32 %s178, 1
        %s271 = scalar_lea.sflag [#allocation5], %s270
        %s272 = sand.u32 %s178, 1
        %s273 = scalar_lea.vmem [#allocation4], %s272
        %p274 = scmp.lt.s32.totalorder %s24, 1
        %s275 = scalar_select %p274, %s24, 1
        %s276 = smul.addr %s275, 54
        %s277 = smul.addr %s276, 8
        %s278 = scalar_lea.vmem %s0, %s277
        %p279 = scmp.lt.s32.totalorder %s24, 1
        %s280 = scalar_select %p279, %s24, 1
        %s281 = smul.addr %s280, 2
        %s282 = scalar_lea.vmem %s1, %s281
        %p283 = scmp.lt.s32.totalorder %s24, 1
        %s284 = scalar_select %p283, %s24, 1
        %s285 = smul.addr %s284, 54
        %s286 = smul.addr %s285, 8
        %s287 = scalar_lea.vmem %s4, %s286
        %v288 = vld [vmem:[%s278] sm:$0xff]
        %v289 = vld [vmem:[%s278 + $0x8] sm:$0xff]
        %v290 = vld [vmem:[%s278 + $0x10] sm:$0x3]
        %v291 = vld [vmem:[%s278 + $0x18] sm:$0xff]
        %v292 = vld [vmem:[%s278 + $0x20] sm:$0xff]
        %v293 = vld [vmem:[%s278 + $0x28] sm:$0x3]
        %v294 = vld [vmem:[%s278 + $0x30] sm:$0xff]
        %v295 = vld [vmem:[%s278 + $0x38] sm:$0xff]
        %v296 = vld [vmem:[%s278 + $0x40] sm:$0x3]
        %v297 = vld [vmem:[%s278 + $0x48] sm:$0xff]
        %v298 = vld [vmem:[%s278 + $0x50] sm:$0xff]
        %v299 = vld [vmem:[%s278 + $0x58] sm:$0x3]
        %v300 = vld [vmem:[%s278 + $0x60] sm:$0xff]
        %v301 = vld [vmem:[%s278 + $0x68] sm:$0xff]
        %v302 = vld [vmem:[%s278 + $0x70] sm:$0x3]
        %v303 = vld [vmem:[%s278 + $0x78] sm:$0xff]
        %v304 = vld [vmem:[%s278 + $0x80] sm:$0xff]
        %v305 = vld [vmem:[%s278 + $0x88] sm:$0x3]
        %v306 = vld [vmem:[%s278 + $0x90] sm:$0xff]
        %v307 = vld [vmem:[%s278 + $0x98] sm:$0xff]
        %v308 = vld [vmem:[%s278 + $0xa0] sm:$0x3]
        %v309 = vld [vmem:[%s278 + $0xa8] sm:$0xff]
        %v310 = vld [vmem:[%s278 + $0xb0] sm:$0xff]
        %v311 = vld [vmem:[%s278 + $0xb8] sm:$0x3]
        %v312 = vld [vmem:[%s278 + $0xc0] sm:$0xff]
        %v313 = vld [vmem:[%s278 + $0xc8] sm:$0xff]
        %v314 = vld [vmem:[%s278 + $0xd0] sm:$0x3]
        %v315 = vld [vmem:[%s278 + $0xd8] sm:$0xff]
        %v316 = vld [vmem:[%s278 + $0xe0] sm:$0xff]
        %v317 = vld [vmem:[%s278 + $0xe8] sm:$0x3]
        %v318 = vld [vmem:[%s278 + $0xf0] sm:$0xff]
        %v319 = vld [vmem:[%s278 + $0xf8] sm:$0xff]
        %v320 = vld [vmem:[%s278 + $0x100] sm:$0x3]
        %v321 = vld [vmem:[%s278 + $0x108] sm:$0xff]
        %v322 = vld [vmem:[%s278 + $0x110] sm:$0xff]
        %v323 = vld [vmem:[%s278 + $0x118] sm:$0x3]
        %v324 = vld [vmem:[%s278 + $0x120] sm:$0xff]
        %v325 = vld [vmem:[%s278 + $0x128] sm:$0xff]
        %v326 = vld [vmem:[%s278 + $0x130] sm:$0x3]
        %v327 = vld [vmem:[%s278 + $0x138] sm:$0xff]
        %v328 = vld [vmem:[%s278 + $0x140] sm:$0xff]
        %v329 = vld [vmem:[%s278 + $0x148] sm:$0x3]
        %v330 = vld [vmem:[%s278 + $0x150] sm:$0xff]
        %v331 = vld [vmem:[%s278 + $0x158] sm:$0xff]
        %v332 = vld [vmem:[%s278 + $0x160] sm:$0x3]
        %v333 = vld [vmem:[%s278 + $0x168] sm:$0xff]
        %v334 = vld [vmem:[%s278 + $0x170] sm:$0xff]
        %v335 = vld [vmem:[%s278 + $0x178] sm:$0x3]
        %v336 = vld [vmem:[%s278 + $0x180] sm:$0xff]
        %v337 = vld [vmem:[%s278 + $0x188] sm:$0xff]
        %v338 = vld [vmem:[%s278 + $0x190] sm:$0x3]
        %v339 = vld [vmem:[%s278 + $0x198] sm:$0xff]
        %v340 = vld [vmem:[%s278 + $0x1a0] sm:$0xff]
        %v341 = vld [vmem:[%s278 + $0x1a8] sm:$0x3]
        %v342 = vld [vmem:[%s282] sm:$0x1]
        %v343 = vld [vmem:[%s282 + $0x1] sm:$0x1]
        %v344 = vperm.slane %v342, 0
        %v345 = vmul.f32 %v288, %v344
        %v346 = vmul.f32 %v289, %v344
        %v347 = vmul.f32 %v290, %v344
        %v348 = vmul.f32 %v291, %v344
        %v349 = vmul.f32 %v292, %v344
        %v350 = vmul.f32 %v293, %v344
        %v351 = vmul.f32 %v294, %v344
        %v352 = vmul.f32 %v295, %v344
        %v353 = vmul.f32 %v296, %v344
        %v354 = vmul.f32 %v297, %v344
        %v355 = vmul.f32 %v298, %v344
        %v356 = vmul.f32 %v299, %v344
        %v357 = vmul.f32 %v300, %v344
        %v358 = vmul.f32 %v301, %v344
        %v359 = vmul.f32 %v302, %v344
        %v360 = vmul.f32 %v303, %v344
        %v361 = vmul.f32 %v304, %v344
        %v362 = vmul.f32 %v305, %v344
        %v363 = vmul.f32 %v306, %v344
        %v364 = vmul.f32 %v307, %v344
        %v365 = vmul.f32 %v308, %v344
        %v366 = vmul.f32 %v309, %v344
        %v367 = vmul.f32 %v310, %v344
        %v368 = vmul.f32 %v311, %v344
        %v369 = vmul.f32 %v312, %v344
        %v370 = vmul.f32 %v313, %v344
        %v371 = vmul.f32 %v314, %v344
        %v372 = vmul.f32 %v315, %v344
        %v373 = vmul.f32 %v316, %v344
        %v374 = vmul.f32 %v317, %v344
        %v375 = vmul.f32 %v318, %v344
        %v376 = vmul.f32 %v319, %v344
        %v377 = vmul.f32 %v320, %v344
        %v378 = vmul.f32 %v321, %v344
        %v379 = vmul.f32 %v322, %v344
        %v380 = vmul.f32 %v323, %v344
        %v381 = vmul.f32 %v324, %v344
        %v382 = vmul.f32 %v325, %v344
        %v383 = vmul.f32 %v326, %v344
        %v384 = vmul.f32 %v327, %v344
        %v385 = vmul.f32 %v328, %v344
        %v386 = vmul.f32 %v329, %v344
        %v387 = vmul.f32 %v330, %v344
        %v388 = vmul.f32 %v331, %v344
        %v389 = vmul.f32 %v332, %v344
        %v390 = vmul.f32 %v333, %v344
        %v391 = vmul.f32 %v334, %v344
        %v392 = vmul.f32 %v335, %v344
        %v393 = vmul.f32 %v336, %v344
        %v394 = vmul.f32 %v337, %v344
        %v395 = vmul.f32 %v338, %v344
        %v396 = vmul.f32 %v339, %v344
        %v397 = vmul.f32 %v340, %v344
        %v398 = vmul.f32 %v341, %v344
        %v399 = vperm.slane %v343, 0
        %v400 = vadd.f32 %v345, %v399
        %v401 = vadd.f32 %v346, %v399
        %v402 = vadd.f32 %v347, %v399
        %v403 = vadd.f32 %v348, %v399
        %v404 = vadd.f32 %v349, %v399
        %v405 = vadd.f32 %v350, %v399
        %v406 = vadd.f32 %v351, %v399
        %v407 = vadd.f32 %v352, %v399
        %v408 = vadd.f32 %v353, %v399
        %v409 = vadd.f32 %v354, %v399
        %v410 = vadd.f32 %v355, %v399
        %v411 = vadd.f32 %v356, %v399
        %v412 = vadd.f32 %v357, %v399
        %v413 = vadd.f32 %v358, %v399
        %v414 = vadd.f32 %v359, %v399
        %v415 = vadd.f32 %v360, %v399
        %v416 = vadd.f32 %v361, %v399
        %v417 = vadd.f32 %v362, %v399
        %v418 = vadd.f32 %v363, %v399
        %v419 = vadd.f32 %v364, %v399
        %v420 = vadd.f32 %v365, %v399
        %v421 = vadd.f32 %v366, %v399
        %v422 = vadd.f32 %v367, %v399
        %v423 = vadd.f32 %v368, %v399
        %v424 = vadd.f32 %v369, %v399
        %v425 = vadd.f32 %v370, %v399
        %v426 = vadd.f32 %v371, %v399
        %v427 = vadd.f32 %v372, %v399
        %v428 = vadd.f32 %v373, %v399
        %v429 = vadd.f32 %v374, %v399
        %v430 = vadd.f32 %v375, %v399
        %v431 = vadd.f32 %v376, %v399
        %v432 = vadd.f32 %v377, %v399
        %v433 = vadd.f32 %v378, %v399
        %v434 = vadd.f32 %v379, %v399
        %v435 = vadd.f32 %v380, %v399
        %v436 = vadd.f32 %v381, %v399
        %v437 = vadd.f32 %v382, %v399
        %v438 = vadd.f32 %v383, %v399
        %v439 = vadd.f32 %v384, %v399
        %v440 = vadd.f32 %v385, %v399
        %v441 = vadd.f32 %v386, %v399
        %v442 = vadd.f32 %v387, %v399
        %v443 = vadd.f32 %v388, %v399
        %v444 = vadd.f32 %v389, %v399
        %v445 = vadd.f32 %v390, %v399
        %v446 = vadd.f32 %v391, %v399
        %v447 = vadd.f32 %v392, %v399
        %v448 = vadd.f32 %v393, %v399
        %v449 = vadd.f32 %v394, %v399
        %v450 = vadd.f32 %v395, %v399
        %v451 = vadd.f32 %v396, %v399
        %v452 = vadd.f32 %v397, %v399
        %v453 = vadd.f32 %v398, %v399
        %v454 = vmax.f32 %v400, 0.0
        %v455 = vmax.f32 %v401, 0.0
        %v456 = vmax.f32 %v402, 0.0
        %v457 = vmax.f32 %v403, 0.0
        %v458 = vmax.f32 %v404, 0.0
        %v459 = vmax.f32 %v405, 0.0
        %v460 = vmax.f32 %v406, 0.0
        %v461 = vmax.f32 %v407, 0.0
        %v462 = vmax.f32 %v408, 0.0
        %v463 = vmax.f32 %v409, 0.0
        %v464 = vmax.f32 %v410, 0.0
        %v465 = vmax.f32 %v411, 0.0
        %v466 = vmax.f32 %v412, 0.0
        %v467 = vmax.f32 %v413, 0.0
        %v468 = vmax.f32 %v414, 0.0
        %v469 = vmax.f32 %v415, 0.0
        %v470 = vmax.f32 %v416, 0.0
        %v471 = vmax.f32 %v417, 0.0
        %v472 = vmax.f32 %v418, 0.0
        %v473 = vmax.f32 %v419, 0.0
        %v474 = vmax.f32 %v420, 0.0
        %v475 = vmax.f32 %v421, 0.0
        %v476 = vmax.f32 %v422, 0.0
        %v477 = vmax.f32 %v423, 0.0
        %v478 = vmax.f32 %v424, 0.0
        %v479 = vmax.f32 %v425, 0.0
        %v480 = vmax.f32 %v426, 0.0
        %v481 = vmax.f32 %v427, 0.0
        %v482 = vmax.f32 %v428, 0.0
        %v483 = vmax.f32 %v429, 0.0
        %v484 = vmax.f32 %v430, 0.0
        %v485 = vmax.f32 %v431, 0.0
        %v486 = vmax.f32 %v432, 0.0
        %v487 = vmax.f32 %v433, 0.0
        %v488 = vmax.f32 %v434, 0.0
        %v489 = vmax.f32 %v435, 0.0
        %v490 = vmax.f32 %v436, 0.0
        %v491 = vmax.f32 %v437, 0.0
        %v492 = vmax.f32 %v438, 0.0
        %v493 = vmax.f32 %v439, 0.0
        %v494 = vmax.f32 %v440, 0.0
        %v495 = vmax.f32 %v441, 0.0
        %v496 = vmax.f32 %v442, 0.0
        %v497 = vmax.f32 %v443, 0.0
        %v498 = vmax.f32 %v444, 0.0
        %v499 = vmax.f32 %v445, 0.0
        %v500 = vmax.f32 %v446, 0.0
        %v501 = vmax.f32 %v447, 0.0
        %v502 = vmax.f32 %v448, 0.0
        %v503 = vmax.f32 %v449, 0.0
        %v504 = vmax.f32 %v450, 0.0
        %v505 = vmax.f32 %v451, 0.0
        %v506 = vmax.f32 %v452, 0.0
        %v507 = vmax.f32 %v453, 0.0
        %v508 = vlaneseq
        %v509 = vshrl.u32 %v508, 7
        %v510 = vadd.s32 %v509, 8
        %v511 = vadd.s32 %v509, 16
        %vm512 = vcmp.ge.s32.totalorder %v509, 1
        %vm513 = vcmp.ge.s32.totalorder %v510, 1
        %vm514 = vcmp.ge.s32.totalorder %v511, 1
        %vm515 = vmand 0, %vm512
        %vm516 = vmand 0, %vm513
        %vm517 = vmand 0, %vm514
        %vm518 = vmand 1, %vm512
        %vm519 = vmand 1, %vm513
        %vm520 = vmand 1, %vm514
        %vm521 = vcmp.le.s32.totalorder %v509, 16
        %vm522 = vcmp.le.s32.totalorder %v510, 16
        %vm523 = vcmp.le.s32.totalorder %v511, 16
        %vm524 = vmand %vm515, %vm521
        %vm525 = vmand %vm516, %vm522
        %vm526 = vmand %vm517, %vm523
        %vm527 = vmand %vm518, %vm521
        %vm528 = vmand %vm519, %vm522
        %vm529 = vmand %vm520, %vm523
        %v530 = vsel %vm524, 1, 0
        %v531 = vsel %vm525, 1, 0
        %v532 = vsel %vm526, 1, 0
        %v533 = vsel %vm527, 1, 0
        %v534 = vsel %vm528, 1, 0
        %v535 = vsel %vm529, 1, 0
        %vm536 = vcmp.eq.s32.totalorder %v530, 1
        %vm537 = vcmp.eq.s32.totalorder %v531, 1
        %vm538 = vcmp.eq.s32.totalorder %v532, 1
        %vm539 = vcmp.eq.s32.totalorder %v533, 1
        %vm540 = vcmp.eq.s32.totalorder %v534, 1
        %vm541 = vcmp.eq.s32.totalorder %v535, 1
        %v542 = vsel %vm536, %v454, 0.0
        %v543 = vsel %vm537, %v455, 0.0
        %v544 = vsel %vm538, %v456, 0.0
        %v545 = vsel %vm539, %v457, 0.0
        %v546 = vsel %vm540, %v458, 0.0
        %v547 = vsel %vm541, %v459, 0.0
        %v548 = vsel %vm539, %v460, 0.0
        %v549 = vsel %vm540, %v461, 0.0
        %v550 = vsel %vm541, %v462, 0.0
        %v551 = vsel %vm539, %v463, 0.0
        %v552 = vsel %vm540, %v464, 0.0
        %v553 = vsel %vm541, %v465, 0.0
        %v554 = vsel %vm539, %v466, 0.0
        %v555 = vsel %vm540, %v467, 0.0
        %v556 = vsel %vm541, %v468, 0.0
        %v557 = vsel %vm539, %v469, 0.0
        %v558 = vsel %vm540, %v470, 0.0
        %v559 = vsel %vm541, %v471, 0.0
        %v560 = vsel %vm539, %v472, 0.0
        %v561 = vsel %vm540, %v473, 0.0
        %v562 = vsel %vm541, %v474, 0.0
        %v563 = vsel %vm539, %v475, 0.0
        %v564 = vsel %vm540, %v476, 0.0
        %v565 = vsel %vm541, %v477, 0.0
        %v566 = vsel %vm539, %v478, 0.0
        %v567 = vsel %vm540, %v479, 0.0
        %v568 = vsel %vm541, %v480, 0.0
        %v569 = vsel %vm539, %v481, 0.0
        %v570 = vsel %vm540, %v482, 0.0
        %v571 = vsel %vm541, %v483, 0.0
        %v572 = vsel %vm539, %v484, 0.0
        %v573 = vsel %vm540, %v485, 0.0
        %v574 = vsel %vm541, %v486, 0.0
        %v575 = vsel %vm539, %v487, 0.0
        %v576 = vsel %vm540, %v488, 0.0
        %v577 = vsel %vm541, %v489, 0.0
        %v578 = vsel %vm539, %v490, 0.0
        %v579 = vsel %vm540, %v491, 0.0
        %v580 = vsel %vm541, %v492, 0.0
        %v581 = vsel %vm539, %v493, 0.0
        %v582 = vsel %vm540, %v494, 0.0
        %v583 = vsel %vm541, %v495, 0.0
        %v584 = vsel %vm539, %v496, 0.0
        %v585 = vsel %vm540, %v497, 0.0
        %v586 = vsel %vm541, %v498, 0.0
        %v587 = vsel %vm539, %v499, 0.0
        %v588 = vsel %vm540, %v500, 0.0
        %v589 = vsel %vm541, %v501, 0.0
        %v590 = vsel %vm539, %v502, 0.0
        %v591 = vsel %vm540, %v503, 0.0
        %v592 = vsel %vm541, %v504, 0.0
        %v593 = vsel %vm536, %v505, 0.0
        %v594 = vsel %vm537, %v506, 0.0
        %v595 = vsel %vm538, %v507, 0.0
        %v596 = vld [vmem:[%s2] sm:$0xf]
        %vm645 = vcmask 1046528
        %v646 = vrot.slane %v542, 1
        %v647 = vrot.slane %v543, 1
        %v648 = vsel %vm645, %v646, %v647
        %v649 = vrot.slane %v544, 1
        %v650 = vsel %vm645, %v647, %v649
        %v651 = vrot.slane %v545, 1
        %v652 = vrot.slane %v546, 1
        %v653 = vsel %vm645, %v651, %v652
        %v654 = vrot.slane %v547, 1
        %v655 = vsel %vm645, %v652, %v654
        %v656 = vrot.slane %v548, 1
        %v657 = vrot.slane %v549, 1
        %v658 = vsel %vm645, %v656, %v657
        %v659 = vrot.slane %v550, 1
        %v660 = vsel %vm645, %v657, %v659
        %v661 = vrot.slane %v551, 1
        %v662 = vrot.slane %v552, 1
        %v663 = vsel %vm645, %v661, %v662
        %v664 = vrot.slane %v553, 1
        %v665 = vsel %vm645, %v662, %v664
        %v666 = vrot.slane %v554, 1
        %v667 = vrot.slane %v555, 1
        %v668 = vsel %vm645, %v666, %v667
        %v669 = vrot.slane %v556, 1
        %v670 = vsel %vm645, %v667, %v669
        %v671 = vrot.slane %v557, 1
        %v672 = vrot.slane %v558, 1
        %v673 = vsel %vm645, %v671, %v672
        %v674 = vrot.slane %v559, 1
        %v675 = vsel %vm645, %v672, %v674
        %v676 = vrot.slane %v560, 1
        %v677 = vrot.slane %v561, 1
        %v678 = vsel %vm645, %v676, %v677
        %v679 = vrot.slane %v562, 1
        %v680 = vsel %vm645, %v677, %v679
        %v681 = vrot.slane %v563, 1
        %v682 = vrot.slane %v564, 1
        %v683 = vsel %vm645, %v681, %v682
        %v684 = vrot.slane %v565, 1
        %v685 = vsel %vm645, %v682, %v684
        %v686 = vrot.slane %v566, 1
        %v687 = vrot.slane %v567, 1
        %v688 = vsel %vm645, %v686, %v687
        %v689 = vrot.slane %v568, 1
        %v690 = vsel %vm645, %v687, %v689
        %v691 = vrot.slane %v569, 1
        %v692 = vrot.slane %v570, 1
        %v693 = vsel %vm645, %v691, %v692
        %v694 = vrot.slane %v571, 1
        %v695 = vsel %vm645, %v692, %v694
        %v696 = vrot.slane %v572, 1
        %v697 = vrot.slane %v573, 1
        %v698 = vsel %vm645, %v696, %v697
        %v699 = vrot.slane %v574, 1
        %v700 = vsel %vm645, %v697, %v699
        %v701 = vrot.slane %v575, 1
        %v702 = vrot.slane %v576, 1
        %v703 = vsel %vm645, %v701, %v702
        %v704 = vrot.slane %v577, 1
        %v705 = vsel %vm645, %v702, %v704
        %v706 = vrot.slane %v578, 1
        %v707 = vrot.slane %v579, 1
        %v708 = vsel %vm645, %v706, %v707
        %v709 = vrot.slane %v580, 1
        %v710 = vsel %vm645, %v707, %v709
        %v711 = vrot.slane %v581, 1
        %v712 = vrot.slane %v582, 1
        %v713 = vsel %vm645, %v711, %v712
        %v714 = vrot.slane %v583, 1
        %v715 = vsel %vm645, %v712, %v714
        %v716 = vrot.slane %v584, 1
        %v717 = vrot.slane %v585, 1
        %v718 = vsel %vm645, %v716, %v717
        %v719 = vrot.slane %v586, 1
        %v720 = vsel %vm645, %v717, %v719
        %v721 = vrot.slane %v587, 1
        %v722 = vrot.slane %v588, 1
        %v723 = vsel %vm645, %v721, %v722
        %v724 = vrot.slane %v589, 1
        %v725 = vsel %vm645, %v722, %v724
        %s726 = scalar_lea.vmem %s2, 4
        %v727 = vld [vmem:[%s726] sm:$0xf]
        %vm728 = vcmask 31744
        %v729 = vsel %vm728, %v648, 0
        %v731 = vsel %vm728, %v650, 0
        %v733 = vsel %vm728, %v653, 0
        %v735 = vsel %vm728, %v655, 0
        %v737 = vsel %vm728, %v658, 0
        %v739 = vsel %vm728, %v660, 0
        %v741 = vsel %vm728, %v663, 0
        %v743 = vsel %vm728, %v665, 0
        %v745 = vsel %vm728, %v668, 0
        %v747 = vsel %vm728, %v670, 0
        %v749 = vsel %vm728, %v673, 0
        %v751 = vsel %vm728, %v675, 0
        %v753 = vsel %vm728, %v678, 0
        %v755 = vsel %vm728, %v680, 0
        %v757 = vsel %vm728, %v683, 0
        %v759 = vsel %vm728, %v685, 0
        %v761 = vsel %vm728, %v688, 0
        %v763 = vsel %vm728, %v690, 0
        %v765 = vsel %vm728, %v693, 0
        %v767 = vsel %vm728, %v695, 0
        %v769 = vsel %vm728, %v698, 0
        %v771 = vsel %vm728, %v700, 0
        %v773 = vsel %vm728, %v703, 0
        %v775 = vsel %vm728, %v705, 0
        %v777 = vsel %vm728, %v708, 0
        %v779 = vsel %vm728, %v710, 0
        %v781 = vsel %vm728, %v713, 0
        %v783 = vsel %vm728, %v715, 0
        %v785 = vsel %vm728, %v718, 0
        %v787 = vsel %vm728, %v720, 0
        %v789 = vsel %vm728, %v723, 0
        %v791 = vsel %vm728, %v725, 0
        %vm793 = vcmask 1043456
        %v795 = vsel %vm793, %v727, 0
        %797 = vmatpush.msra.mxu0 0.0
        %798 = vmatpush.msra.mxu0 0.0
        %799 = vmatpush.msra.mxu0 0.0
        %800 = vmatpush.msra.mxu0 0.0
        %801 = vmatpush.msra.mxu0 0.0
        %802 = vmatpush.msra.mxu0 0.0
        %803 = vmatpush.msra.mxu0 0.0
        %804 = vmatpush.msra.mxu0 0.0
        %805 = vmatpush.msra.mxu0 0.0
        %806 = vmatpush.msra.mxu0 0.0
        %807 = vmatpush.msra.mxu0 0.0
        %808 = vmatpush.msra.mxu0 0.0
        %809 = vmatpush.msra.mxu0 0.0
        %810 = vmatpush.msra.mxu0 0.0
        %811 = vmatpush.msra.mxu0 0.0
        %812 = vmatpush.msra.mxu0 %v795
        %813 = vmatmul.f32.gmra.mxu0 %v729
        %v814 = vpop.f32.mrf.mxu0
        %v815 = vadd.f32 0.0, %v814
        %816 = vmatmul.f32.gmra.mxu0 %v731
        %v817 = vpop.f32.mrf.mxu0
        %v818 = vadd.f32 0.0, %v817
        %819 = vmatmul.f32.gmra.mxu0 %v733
        %v820 = vpop.f32.mrf.mxu0
        %v821 = vadd.f32 0.0, %v820
        %822 = vmatmul.f32.gmra.mxu0 %v735
        %v823 = vpop.f32.mrf.mxu0
        %v824 = vadd.f32 0.0, %v823
        %825 = vmatmul.f32.gmra.mxu0 %v737
        %v826 = vpop.f32.mrf.mxu0
        %v827 = vadd.f32 0.0, %v826
        %828 = vmatmul.f32.gmra.mxu0 %v739
        %v829 = vpop.f32.mrf.mxu0
        %v830 = vadd.f32 0.0, %v829
        %831 = vmatmul.f32.gmra.mxu0 %v741
        %v832 = vpop.f32.mrf.mxu0
        %v833 = vadd.f32 0.0, %v832
        %834 = vmatmul.f32.gmra.mxu0 %v743
        %v835 = vpop.f32.mrf.mxu0
        %v836 = vadd.f32 0.0, %v835
        %837 = vmatmul.f32.gmra.mxu0 %v745
        %v838 = vpop.f32.mrf.mxu0
        %v839 = vadd.f32 0.0, %v838
        %840 = vmatmul.f32.gmra.mxu0 %v747
        %v841 = vpop.f32.mrf.mxu0
        %v842 = vadd.f32 0.0, %v841
        %843 = vmatmul.f32.gmra.mxu0 %v749
        %v844 = vpop.f32.mrf.mxu0
        %v845 = vadd.f32 0.0, %v844
        %846 = vmatmul.f32.gmra.mxu0 %v751
        %v847 = vpop.f32.mrf.mxu0
        %v848 = vadd.f32 0.0, %v847
        %849 = vmatmul.f32.gmra.mxu0 %v753
        %v850 = vpop.f32.mrf.mxu0
        %v851 = vadd.f32 0.0, %v850
        %852 = vmatmul.f32.gmra.mxu0 %v755
        %v853 = vpop.f32.mrf.mxu0
        %v854 = vadd.f32 0.0, %v853
        %855 = vmatmul.f32.gmra.mxu0 %v757
        %v856 = vpop.f32.mrf.mxu0
        %v857 = vadd.f32 0.0, %v856
        %858 = vmatmul.f32.gmra.mxu0 %v759
        %v859 = vpop.f32.mrf.mxu0
        %v860 = vadd.f32 0.0, %v859
        %861 = vmatmul.f32.gmra.mxu0 %v761
        %v862 = vpop.f32.mrf.mxu0
        %v863 = vadd.f32 0.0, %v862
        %864 = vmatmul.f32.gmra.mxu0 %v763
        %v865 = vpop.f32.mrf.mxu0
        %v866 = vadd.f32 0.0, %v865
        %867 = vmatmul.f32.gmra.mxu0 %v765
        %v868 = vpop.f32.mrf.mxu0
        %v869 = vadd.f32 0.0, %v868
        %870 = vmatmul.f32.gmra.mxu0 %v767
        %v871 = vpop.f32.mrf.mxu0
        %v872 = vadd.f32 0.0, %v871
        %873 = vmatmul.f32.gmra.mxu0 %v769
        %v874 = vpop.f32.mrf.mxu0
        %v875 = vadd.f32 0.0, %v874
        %876 = vmatmul.f32.gmra.mxu0 %v771
        %v877 = vpop.f32.mrf.mxu0
        %v878 = vadd.f32 0.0, %v877
        %879 = vmatmul.f32.gmra.mxu0 %v773
        %v880 = vpop.f32.mrf.mxu0
        %v881 = vadd.f32 0.0, %v880
        %882 = vmatmul.f32.gmra.mxu0 %v775
        %v883 = vpop.f32.mrf.mxu0
        %v884 = vadd.f32 0.0, %v883
        %885 = vmatmul.f32.gmra.mxu0 %v777
        %v886 = vpop.f32.mrf.mxu0
        %v887 = vadd.f32 0.0, %v886
        %888 = vmatmul.f32.gmra.mxu0 %v779
        %v889 = vpop.f32.mrf.mxu0
        %v890 = vadd.f32 0.0, %v889
        %891 = vmatmul.f32.gmra.mxu0 %v781
        %v892 = vpop.f32.mrf.mxu0
        %v893 = vadd.f32 0.0, %v892
        %894 = vmatmul.f32.gmra.mxu0 %v783
        %v895 = vpop.f32.mrf.mxu0
        %v896 = vadd.f32 0.0, %v895
        %897 = vmatmul.f32.gmra.mxu0 %v785
        %v898 = vpop.f32.mrf.mxu0
        %v899 = vadd.f32 0.0, %v898
        %900 = vmatmul.f32.gmra.mxu0 %v787
        %v901 = vpop.f32.mrf.mxu0
        %v902 = vadd.f32 0.0, %v901
        %903 = vmatmul.f32.gmra.mxu0 %v789
        %v904 = vpop.f32.mrf.mxu0
        %v905 = vadd.f32 0.0, %v904
        %906 = vmatmul.f32.gmra.mxu0 %v791
        %v907 = vpop.f32.mrf.mxu0
        %v908 = vadd.f32 0.0, %v907
        %909 = vdwg.mxu0
        %v910 = vsel %vm728, %v542, 0
        %v912 = vsel %vm728, %v543, 0
        %v914 = vsel %vm728, %v545, 0
        %v916 = vsel %vm728, %v546, 0
        %v918 = vsel %vm728, %v548, 0
        %v920 = vsel %vm728, %v549, 0
        %v922 = vsel %vm728, %v551, 0
        %v924 = vsel %vm728, %v552, 0
        %v926 = vsel %vm728, %v554, 0
        %v928 = vsel %vm728, %v555, 0
        %v930 = vsel %vm728, %v557, 0
        %v932 = vsel %vm728, %v558, 0
        %v934 = vsel %vm728, %v560, 0
        %v936 = vsel %vm728, %v561, 0
        %v938 = vsel %vm728, %v563, 0
        %v940 = vsel %vm728, %v564, 0
        %v942 = vsel %vm728, %v566, 0
        %v944 = vsel %vm728, %v567, 0
        %v946 = vsel %vm728, %v569, 0
        %v948 = vsel %vm728, %v570, 0
        %v950 = vsel %vm728, %v572, 0
        %v952 = vsel %vm728, %v573, 0
        %v954 = vsel %vm728, %v575, 0
        %v956 = vsel %vm728, %v576, 0
        %v958 = vsel %vm728, %v578, 0
        %v960 = vsel %vm728, %v579, 0
        %v962 = vsel %vm728, %v581, 0
        %v964 = vsel %vm728, %v582, 0
        %v966 = vsel %vm728, %v584, 0
        %v968 = vsel %vm728, %v585, 0
        %v970 = vsel %vm728, %v587, 0
        %v972 = vsel %vm728, %v588, 0
        %v975 = vsel %vm793, %v596, 0
        %977 = vmatpush.msra.mxu0 0.0
        %978 = vmatpush.msra.mxu0 0.0
        %979 = vmatpush.msra.mxu0 0.0
        %980 = vmatpush.msra.mxu0 0.0
        %981 = vmatpush.msra.mxu0 0.0
        %982 = vmatpush.msra.mxu0 0.0
        %983 = vmatpush.msra.mxu0 0.0
        %984 = vmatpush.msra.mxu0 0.0
        %985 = vmatpush.msra.mxu0 0.0
        %986 = vmatpush.msra.mxu0 0.0
        %987 = vmatpush.msra.mxu0 0.0
        %988 = vmatpush.msra.mxu0 0.0
        %989 = vmatpush.msra.mxu0 0.0
        %990 = vmatpush.msra.mxu0 0.0
        %991 = vmatpush.msra.mxu0 0.0
        %992 = vmatpush.msra.mxu0 %v975
        %993 = vmatmul.f32.gmra.mxu0 %v910
        %v994 = vpop.f32.mrf.mxu0
        %v995 = vadd.f32 %v815, %v994
        %996 = vmatmul.f32.gmra.mxu0 %v912
        %v997 = vpop.f32.mrf.mxu0
        %v998 = vadd.f32 %v818, %v997
        %999 = vmatmul.f32.gmra.mxu0 %v914
        %v1000 = vpop.f32.mrf.mxu0
        %v1001 = vadd.f32 %v821, %v1000
        %1002 = vmatmul.f32.gmra.mxu0 %v916
        %v1003 = vpop.f32.mrf.mxu0
        %v1004 = vadd.f32 %v824, %v1003
        %1005 = vmatmul.f32.gmra.mxu0 %v918
        %v1006 = vpop.f32.mrf.mxu0
        %v1007 = vadd.f32 %v827, %v1006
        %1008 = vmatmul.f32.gmra.mxu0 %v920
        %v1009 = vpop.f32.mrf.mxu0
        %v1010 = vadd.f32 %v830, %v1009
        %1011 = vmatmul.f32.gmra.mxu0 %v922
        %v1012 = vpop.f32.mrf.mxu0
        %v1013 = vadd.f32 %v833, %v1012
        %1014 = vmatmul.f32.gmra.mxu0 %v924
        %v1015 = vpop.f32.mrf.mxu0
        %v1016 = vadd.f32 %v836, %v1015
        %1017 = vmatmul.f32.gmra.mxu0 %v926
        %v1018 = vpop.f32.mrf.mxu0
        %v1019 = vadd.f32 %v839, %v1018
        %1020 = vmatmul.f32.gmra.mxu0 %v928
        %v1021 = vpop.f32.mrf.mxu0
        %v1022 = vadd.f32 %v842, %v1021
        %1023 = vmatmul.f32.gmra.mxu0 %v930
        %v1024 = vpop.f32.mrf.mxu0
        %v1025 = vadd.f32 %v845, %v1024
        %1026 = vmatmul.f32.gmra.mxu0 %v932
        %v1027 = vpop.f32.mrf.mxu0
        %v1028 = vadd.f32 %v848, %v1027
        %1029 = vmatmul.f32.gmra.mxu0 %v934
        %v1030 = vpop.f32.mrf.mxu0
        %v1031 = vadd.f32 %v851, %v1030
        %1032 = vmatmul.f32.gmra.mxu0 %v936
        %v1033 = vpop.f32.mrf.mxu0
        %v1034 = vadd.f32 %v854, %v1033
        %1035 = vmatmul.f32.gmra.mxu0 %v938
        %v1036 = vpop.f32.mrf.mxu0
        %v1037 = vadd.f32 %v857, %v1036
        %1038 = vmatmul.f32.gmra.mxu0 %v940
        %v1039 = vpop.f32.mrf.mxu0
        %v1040 = vadd.f32 %v860, %v1039
        %1041 = vmatmul.f32.gmra.mxu0 %v942
        %v1042 = vpop.f32.mrf.mxu0
        %v1043 = vadd.f32 %v863, %v1042
        %1044 = vmatmul.f32.gmra.mxu0 %v944
        %v1045 = vpop.f32.mrf.mxu0
        %v1046 = vadd.f32 %v866, %v1045
        %1047 = vmatmul.f32.gmra.mxu0 %v946
        %v1048 = vpop.f32.mrf.mxu0
        %v1049 = vadd.f32 %v869, %v1048
        %1050 = vmatmul.f32.gmra.mxu0 %v948
        %v1051 = vpop.f32.mrf.mxu0
        %v1052 = vadd.f32 %v872, %v1051
        %1053 = vmatmul.f32.gmra.mxu0 %v950
        %v1054 = vpop.f32.mrf.mxu0
        %v1055 = vadd.f32 %v875, %v1054
        %1056 = vmatmul.f32.gmra.mxu0 %v952
        %v1057 = vpop.f32.mrf.mxu0
        %v1058 = vadd.f32 %v878, %v1057
        %1059 = vmatmul.f32.gmra.mxu0 %v954
        %v1060 = vpop.f32.mrf.mxu0
        %v1061 = vadd.f32 %v881, %v1060
        %1062 = vmatmul.f32.gmra.mxu0 %v956
        %v1063 = vpop.f32.mrf.mxu0
        %v1064 = vadd.f32 %v884, %v1063
        %1065 = vmatmul.f32.gmra.mxu0 %v958
        %v1066 = vpop.f32.mrf.mxu0
        %v1067 = vadd.f32 %v887, %v1066
        %1068 = vmatmul.f32.gmra.mxu0 %v960
        %v1069 = vpop.f32.mrf.mxu0
        %v1070 = vadd.f32 %v890, %v1069
        %1071 = vmatmul.f32.gmra.mxu0 %v962
        %v1072 = vpop.f32.mrf.mxu0
        %v1073 = vadd.f32 %v893, %v1072
        %1074 = vmatmul.f32.gmra.mxu0 %v964
        %v1075 = vpop.f32.mrf.mxu0
        %v1076 = vadd.f32 %v896, %v1075
        %1077 = vmatmul.f32.gmra.mxu0 %v966
        %v1078 = vpop.f32.mrf.mxu0
        %v1079 = vadd.f32 %v899, %v1078
        %1080 = vmatmul.f32.gmra.mxu0 %v968
        %v1081 = vpop.f32.mrf.mxu0
        %v1082 = vadd.f32 %v902, %v1081
        %1083 = vmatmul.f32.gmra.mxu0 %v970
        %v1084 = vpop.f32.mrf.mxu0
        %v1085 = vadd.f32 %v905, %v1084
        %1086 = vmatmul.f32.gmra.mxu0 %v972
        %v1087 = vpop.f32.mrf.mxu0
        %v1088 = vadd.f32 %v908, %v1087
        %1089 = vdwg.mxu0
        %vm1090 = vcmask 1045504
        %v1091 = vrot.slane %v542, 2
        %v1092 = vrot.slane %v543, 2
        %v1093 = vsel %vm1090, %v1091, %v1092
        %v1094 = vrot.slane %v544, 2
        %v1095 = vsel %vm1090, %v1092, %v1094
        %v1096 = vrot.slane %v545, 2
        %v1097 = vrot.slane %v546, 2
        %v1098 = vsel %vm1090, %v1096, %v1097
        %v1099 = vrot.slane %v547, 2
        %v1100 = vsel %vm1090, %v1097, %v1099
        %v1101 = vrot.slane %v548, 2
        %v1102 = vrot.slane %v549, 2
        %v1103 = vsel %vm1090, %v1101, %v1102
        %v1104 = vrot.slane %v550, 2
        %v1105 = vsel %vm1090, %v1102, %v1104
        %v1106 = vrot.slane %v551, 2
        %v1107 = vrot.slane %v552, 2
        %v1108 = vsel %vm1090, %v1106, %v1107
        %v1109 = vrot.slane %v553, 2
        %v1110 = vsel %vm1090, %v1107, %v1109
        %v1111 = vrot.slane %v554, 2
        %v1112 = vrot.slane %v555, 2
        %v1113 = vsel %vm1090, %v1111, %v1112
        %v1114 = vrot.slane %v556, 2
        %v1115 = vsel %vm1090, %v1112, %v1114
        %v1116 = vrot.slane %v557, 2
        %v1117 = vrot.slane %v558, 2
        %v1118 = vsel %vm1090, %v1116, %v1117
        %v1119 = vrot.slane %v559, 2
        %v1120 = vsel %vm1090, %v1117, %v1119
        %v1121 = vrot.slane %v560, 2
        %v1122 = vrot.slane %v561, 2
        %v1123 = vsel %vm1090, %v1121, %v1122
        %v1124 = vrot.slane %v562, 2
        %v1125 = vsel %vm1090, %v1122, %v1124
        %v1126 = vrot.slane %v563, 2
        %v1127 = vrot.slane %v564, 2
        %v1128 = vsel %vm1090, %v1126, %v1127
        %v1129 = vrot.slane %v565, 2
        %v1130 = vsel %vm1090, %v1127, %v1129
        %v1131 = vrot.slane %v566, 2
        %v1132 = vrot.slane %v567, 2
        %v1133 = vsel %vm1090, %v1131, %v1132
        %v1134 = vrot.slane %v568, 2
        %v1135 = vsel %vm1090, %v1132, %v1134
        %v1136 = vrot.slane %v569, 2
        %v1137 = vrot.slane %v570, 2
        %v1138 = vsel %vm1090, %v1136, %v1137
        %v1139 = vrot.slane %v571, 2
        %v1140 = vsel %vm1090, %v1137, %v1139
        %v1141 = vrot.slane %v572, 2
        %v1142 = vrot.slane %v573, 2
        %v1143 = vsel %vm1090, %v1141, %v1142
        %v1144 = vrot.slane %v574, 2
        %v1145 = vsel %vm1090, %v1142, %v1144
        %v1146 = vrot.slane %v575, 2
        %v1147 = vrot.slane %v576, 2
        %v1148 = vsel %vm1090, %v1146, %v1147
        %v1149 = vrot.slane %v577, 2
        %v1150 = vsel %vm1090, %v1147, %v1149
        %v1151 = vrot.slane %v578, 2
        %v1152 = vrot.slane %v579, 2
        %v1153 = vsel %vm1090, %v1151, %v1152
        %v1154 = vrot.slane %v580, 2
        %v1155 = vsel %vm1090, %v1152, %v1154
        %v1156 = vrot.slane %v581, 2
        %v1157 = vrot.slane %v582, 2
        %v1158 = vsel %vm1090, %v1156, %v1157
        %v1159 = vrot.slane %v583, 2
        %v1160 = vsel %vm1090, %v1157, %v1159
        %v1161 = vrot.slane %v584, 2
        %v1162 = vrot.slane %v585, 2
        %v1163 = vsel %vm1090, %v1161, %v1162
        %v1164 = vrot.slane %v586, 2
        %v1165 = vsel %vm1090, %v1162, %v1164
        %v1166 = vrot.slane %v587, 2
        %v1167 = vrot.slane %v588, 2
        %v1168 = vsel %vm1090, %v1166, %v1167
        %v1169 = vrot.slane %v589, 2
        %v1170 = vsel %vm1090, %v1167, %v1169
        %s1171 = scalar_lea.vmem %s2, 8
        %v1172 = vld [vmem:[%s1171] sm:$0xf]
        %v1173 = vsel %vm728, %v1093, 0
        %v1175 = vsel %vm728, %v1095, 0
        %v1177 = vsel %vm728, %v1098, 0
        %v1179 = vsel %vm728, %v1100, 0
        %v1181 = vsel %vm728, %v1103, 0
        %v1183 = vsel %vm728, %v1105, 0
        %v1185 = vsel %vm728, %v1108, 0
        %v1187 = vsel %vm728, %v1110, 0
        %v1189 = vsel %vm728, %v1113, 0
        %v1191 = vsel %vm728, %v1115, 0
        %v1193 = vsel %vm728, %v1118, 0
        %v1195 = vsel %vm728, %v1120, 0
        %v1197 = vsel %vm728, %v1123, 0
        %v1199 = vsel %vm728, %v1125, 0
        %v1201 = vsel %vm728, %v1128, 0
        %v1203 = vsel %vm728, %v1130, 0
        %v1205 = vsel %vm728, %v1133, 0
        %v1207 = vsel %vm728, %v1135, 0
        %v1209 = vsel %vm728, %v1138, 0
        %v1211 = vsel %vm728, %v1140, 0
        %v1213 = vsel %vm728, %v1143, 0
        %v1215 = vsel %vm728, %v1145, 0
        %v1217 = vsel %vm728, %v1148, 0
        %v1219 = vsel %vm728, %v1150, 0
        %v1221 = vsel %vm728, %v1153, 0
        %v1223 = vsel %vm728, %v1155, 0
        %v1225 = vsel %vm728, %v1158, 0
        %v1227 = vsel %vm728, %v1160, 0
        %v1229 = vsel %vm728, %v1163, 0
        %v1231 = vsel %vm728, %v1165, 0
        %v1233 = vsel %vm728, %v1168, 0
        %v1235 = vsel %vm728, %v1170, 0
        %v1238 = vsel %vm793, %v1172, 0
        %1240 = vmatpush.msra.mxu0 0.0
        %1241 = vmatpush.msra.mxu0 0.0
        %1242 = vmatpush.msra.mxu0 0.0
        %1243 = vmatpush.msra.mxu0 0.0
        %1244 = vmatpush.msra.mxu0 0.0
        %1245 = vmatpush.msra.mxu0 0.0
        %1246 = vmatpush.msra.mxu0 0.0
        %1247 = vmatpush.msra.mxu0 0.0
        %1248 = vmatpush.msra.mxu0 0.0
        %1249 = vmatpush.msra.mxu0 0.0
        %1250 = vmatpush.msra.mxu0 0.0
        %1251 = vmatpush.msra.mxu0 0.0
        %1252 = vmatpush.msra.mxu0 0.0
        %1253 = vmatpush.msra.mxu0 0.0
        %1254 = vmatpush.msra.mxu0 0.0
        %1255 = vmatpush.msra.mxu0 %v1238
        %1256 = vmatmul.f32.gmra.mxu0 %v1173
        %v1257 = vpop.f32.mrf.mxu0
        %v1258 = vadd.f32 0.0, %v1257
        %1259 = vmatmul.f32.gmra.mxu0 %v1175
        %v1260 = vpop.f32.mrf.mxu0
        %v1261 = vadd.f32 0.0, %v1260
        %1262 = vmatmul.f32.gmra.mxu0 %v1177
        %v1263 = vpop.f32.mrf.mxu0
        %v1264 = vadd.f32 0.0, %v1263
        %1265 = vmatmul.f32.gmra.mxu0 %v1179
        %v1266 = vpop.f32.mrf.mxu0
        %v1267 = vadd.f32 0.0, %v1266
        %1268 = vmatmul.f32.gmra.mxu0 %v1181
        %v1269 = vpop.f32.mrf.mxu0
        %v1270 = vadd.f32 0.0, %v1269
        %1271 = vmatmul.f32.gmra.mxu0 %v1183
        %v1272 = vpop.f32.mrf.mxu0
        %v1273 = vadd.f32 0.0, %v1272
        %1274 = vmatmul.f32.gmra.mxu0 %v1185
        %v1275 = vpop.f32.mrf.mxu0
        %v1276 = vadd.f32 0.0, %v1275
        %1277 = vmatmul.f32.gmra.mxu0 %v1187
        %v1278 = vpop.f32.mrf.mxu0
        %v1279 = vadd.f32 0.0, %v1278
        %1280 = vmatmul.f32.gmra.mxu0 %v1189
        %v1281 = vpop.f32.mrf.mxu0
        %v1282 = vadd.f32 0.0, %v1281
        %1283 = vmatmul.f32.gmra.mxu0 %v1191
        %v1284 = vpop.f32.mrf.mxu0
        %v1285 = vadd.f32 0.0, %v1284
        %1286 = vmatmul.f32.gmra.mxu0 %v1193
        %v1287 = vpop.f32.mrf.mxu0
        %v1288 = vadd.f32 0.0, %v1287
        %1289 = vmatmul.f32.gmra.mxu0 %v1195
        %v1290 = vpop.f32.mrf.mxu0
        %v1291 = vadd.f32 0.0, %v1290
        %1292 = vmatmul.f32.gmra.mxu0 %v1197
        %v1293 = vpop.f32.mrf.mxu0
        %v1294 = vadd.f32 0.0, %v1293
        %1295 = vmatmul.f32.gmra.mxu0 %v1199
        %v1296 = vpop.f32.mrf.mxu0
        %v1297 = vadd.f32 0.0, %v1296
        %1298 = vmatmul.f32.gmra.mxu0 %v1201
        %v1299 = vpop.f32.mrf.mxu0
        %v1300 = vadd.f32 0.0, %v1299
        %1301 = vmatmul.f32.gmra.mxu0 %v1203
        %v1302 = vpop.f32.mrf.mxu0
        %v1303 = vadd.f32 0.0, %v1302
        %1304 = vmatmul.f32.gmra.mxu0 %v1205
        %v1305 = vpop.f32.mrf.mxu0
        %v1306 = vadd.f32 0.0, %v1305
        %1307 = vmatmul.f32.gmra.mxu0 %v1207
        %v1308 = vpop.f32.mrf.mxu0
        %v1309 = vadd.f32 0.0, %v1308
        %1310 = vmatmul.f32.gmra.mxu0 %v1209
        %v1311 = vpop.f32.mrf.mxu0
        %v1312 = vadd.f32 0.0, %v1311
        %1313 = vmatmul.f32.gmra.mxu0 %v1211
        %v1314 = vpop.f32.mrf.mxu0
        %v1315 = vadd.f32 0.0, %v1314
        %1316 = vmatmul.f32.gmra.mxu0 %v1213
        %v1317 = vpop.f32.mrf.mxu0
        %v1318 = vadd.f32 0.0, %v1317
        %1319 = vmatmul.f32.gmra.mxu0 %v1215
        %v1320 = vpop.f32.mrf.mxu0
        %v1321 = vadd.f32 0.0, %v1320
        %1322 = vmatmul.f32.gmra.mxu0 %v1217
        %v1323 = vpop.f32.mrf.mxu0
        %v1324 = vadd.f32 0.0, %v1323
        %1325 = vmatmul.f32.gmra.mxu0 %v1219
        %v1326 = vpop.f32.mrf.mxu0
        %v1327 = vadd.f32 0.0, %v1326
        %1328 = vmatmul.f32.gmra.mxu0 %v1221
        %v1329 = vpop.f32.mrf.mxu0
        %v1330 = vadd.f32 0.0, %v1329
        %1331 = vmatmul.f32.gmra.mxu0 %v1223
        %v1332 = vpop.f32.mrf.mxu0
        %v1333 = vadd.f32 0.0, %v1332
        %1334 = vmatmul.f32.gmra.mxu0 %v1225
        %v1335 = vpop.f32.mrf.mxu0
        %v1336 = vadd.f32 0.0, %v1335
        %1337 = vmatmul.f32.gmra.mxu0 %v1227
        %v1338 = vpop.f32.mrf.mxu0
        %v1339 = vadd.f32 0.0, %v1338
        %1340 = vmatmul.f32.gmra.mxu0 %v1229
        %v1341 = vpop.f32.mrf.mxu0
        %v1342 = vadd.f32 0.0, %v1341
        %1343 = vmatmul.f32.gmra.mxu0 %v1231
        %v1344 = vpop.f32.mrf.mxu0
        %v1345 = vadd.f32 0.0, %v1344
        %1346 = vmatmul.f32.gmra.mxu0 %v1233
        %v1347 = vpop.f32.mrf.mxu0
        %v1348 = vadd.f32 0.0, %v1347
        %1349 = vmatmul.f32.gmra.mxu0 %v1235
        %v1350 = vpop.f32.mrf.mxu0
        %v1351 = vadd.f32 0.0, %v1350
        %1352 = vdwg.mxu0
        %v1353 = vadd.f32 %v995, %v1258
        %v1354 = vadd.f32 %v998, %v1261
        %v1355 = vadd.f32 %v1001, %v1264
        %v1356 = vadd.f32 %v1004, %v1267
        %v1357 = vadd.f32 %v1007, %v1270
        %v1358 = vadd.f32 %v1010, %v1273
        %v1359 = vadd.f32 %v1013, %v1276
        %v1360 = vadd.f32 %v1016, %v1279
        %v1361 = vadd.f32 %v1019, %v1282
        %v1362 = vadd.f32 %v1022, %v1285
        %v1363 = vadd.f32 %v1025, %v1288
        %v1364 = vadd.f32 %v1028, %v1291
        %v1365 = vadd.f32 %v1031, %v1294
        %v1366 = vadd.f32 %v1034, %v1297
        %v1367 = vadd.f32 %v1037, %v1300
        %v1368 = vadd.f32 %v1040, %v1303
        %v1369 = vadd.f32 %v1043, %v1306
        %v1370 = vadd.f32 %v1046, %v1309
        %v1371 = vadd.f32 %v1049, %v1312
        %v1372 = vadd.f32 %v1052, %v1315
        %v1373 = vadd.f32 %v1055, %v1318
        %v1374 = vadd.f32 %v1058, %v1321
        %v1375 = vadd.f32 %v1061, %v1324
        %v1376 = vadd.f32 %v1064, %v1327
        %v1377 = vadd.f32 %v1067, %v1330
        %v1378 = vadd.f32 %v1070, %v1333
        %v1379 = vadd.f32 %v1073, %v1336
        %v1380 = vadd.f32 %v1076, %v1339
        %v1381 = vadd.f32 %v1079, %v1342
        %v1382 = vadd.f32 %v1082, %v1345
        %v1383 = vadd.f32 %v1085, %v1348
        %v1384 = vadd.f32 %v1088, %v1351
        %s1385 = scalar_lea.vmem %s2, 12
        %v1386 = vld [vmem:[%s1385] sm:$0xf]
        %v1388 = vsel %vm728, %v590, 0
        %v1391 = vsel %vm728, %v591, 0
        %v1394 = vsel %vm793, %v1386, 0
        %1396 = vmatpush.msra.mxu0 0.0
        %1397 = vmatpush.msra.mxu0 0.0
        %1398 = vmatpush.msra.mxu0 0.0
        %1399 = vmatpush.msra.mxu0 0.0
        %1400 = vmatpush.msra.mxu0 0.0
        %1401 = vmatpush.msra.mxu0 0.0
        %1402 = vmatpush.msra.mxu0 0.0
        %1403 = vmatpush.msra.mxu0 0.0
        %1404 = vmatpush.msra.mxu0 0.0
        %1405 = vmatpush.msra.mxu0 0.0
        %1406 = vmatpush.msra.mxu0 0.0
        %1407 = vmatpush.msra.mxu0 0.0
        %1408 = vmatpush.msra.mxu0 0.0
        %1409 = vmatpush.msra.mxu0 0.0
        %1410 = vmatpush.msra.mxu0 0.0
        %1411 = vmatpush.msra.mxu0 %v1394
        %1412 = vmatmul.f32.gmra.mxu0 %v914
        %v1413 = vpop.f32.mrf.mxu0
        %v1414 = vadd.f32 0.0, %v1413
        %1415 = vmatmul.f32.gmra.mxu0 %v916
        %v1416 = vpop.f32.mrf.mxu0
        %v1417 = vadd.f32 0.0, %v1416
        %1418 = vmatmul.f32.gmra.mxu0 %v918
        %v1419 = vpop.f32.mrf.mxu0
        %v1420 = vadd.f32 0.0, %v1419
        %1421 = vmatmul.f32.gmra.mxu0 %v920
        %v1422 = vpop.f32.mrf.mxu0
        %v1423 = vadd.f32 0.0, %v1422
        %1424 = vmatmul.f32.gmra.mxu0 %v922
        %v1425 = vpop.f32.mrf.mxu0
        %v1426 = vadd.f32 0.0, %v1425
        %1427 = vmatmul.f32.gmra.mxu0 %v924
        %v1428 = vpop.f32.mrf.mxu0
        %v1429 = vadd.f32 0.0, %v1428
        %1430 = vmatmul.f32.gmra.mxu0 %v926
        %v1431 = vpop.f32.mrf.mxu0
        %v1432 = vadd.f32 0.0, %v1431
        %1433 = vmatmul.f32.gmra.mxu0 %v928
        %v1434 = vpop.f32.mrf.mxu0
        %v1435 = vadd.f32 0.0, %v1434
        %1436 = vmatmul.f32.gmra.mxu0 %v930
        %v1437 = vpop.f32.mrf.mxu0
        %v1438 = vadd.f32 0.0, %v1437
        %1439 = vmatmul.f32.gmra.mxu0 %v932
        %v1440 = vpop.f32.mrf.mxu0
        %v1441 = vadd.f32 0.0, %v1440
        %1442 = vmatmul.f32.gmra.mxu0 %v934
        %v1443 = vpop.f32.mrf.mxu0
        %v1444 = vadd.f32 0.0, %v1443
        %1445 = vmatmul.f32.gmra.mxu0 %v936
        %v1446 = vpop.f32.mrf.mxu0
        %v1447 = vadd.f32 0.0, %v1446
        %1448 = vmatmul.f32.gmra.mxu0 %v938
        %v1449 = vpop.f32.mrf.mxu0
        %v1450 = vadd.f32 0.0, %v1449
        %1451 = vmatmul.f32.gmra.mxu0 %v940
        %v1452 = vpop.f32.mrf.mxu0
        %v1453 = vadd.f32 0.0, %v1452
        %1454 = vmatmul.f32.gmra.mxu0 %v942
        %v1455 = vpop.f32.mrf.mxu0
        %v1456 = vadd.f32 0.0, %v1455
        %1457 = vmatmul.f32.gmra.mxu0 %v944
        %v1458 = vpop.f32.mrf.mxu0
        %v1459 = vadd.f32 0.0, %v1458
        %1460 = vmatmul.f32.gmra.mxu0 %v946
        %v1461 = vpop.f32.mrf.mxu0
        %v1462 = vadd.f32 0.0, %v1461
        %1463 = vmatmul.f32.gmra.mxu0 %v948
        %v1464 = vpop.f32.mrf.mxu0
        %v1465 = vadd.f32 0.0, %v1464
        %1466 = vmatmul.f32.gmra.mxu0 %v950
        %v1467 = vpop.f32.mrf.mxu0
        %v1468 = vadd.f32 0.0, %v1467
        %1469 = vmatmul.f32.gmra.mxu0 %v952
        %v1470 = vpop.f32.mrf.mxu0
        %v1471 = vadd.f32 0.0, %v1470
        %1472 = vmatmul.f32.gmra.mxu0 %v954
        %v1473 = vpop.f32.mrf.mxu0
        %v1474 = vadd.f32 0.0, %v1473
        %1475 = vmatmul.f32.gmra.mxu0 %v956
        %v1476 = vpop.f32.mrf.mxu0
        %v1477 = vadd.f32 0.0, %v1476
        %1478 = vmatmul.f32.gmra.mxu0 %v958
        %v1479 = vpop.f32.mrf.mxu0
        %v1480 = vadd.f32 0.0, %v1479
        %1481 = vmatmul.f32.gmra.mxu0 %v960
        %v1482 = vpop.f32.mrf.mxu0
        %v1483 = vadd.f32 0.0, %v1482
        %1484 = vmatmul.f32.gmra.mxu0 %v962
        %v1485 = vpop.f32.mrf.mxu0
        %v1486 = vadd.f32 0.0, %v1485
        %1487 = vmatmul.f32.gmra.mxu0 %v964
        %v1488 = vpop.f32.mrf.mxu0
        %v1489 = vadd.f32 0.0, %v1488
        %1490 = vmatmul.f32.gmra.mxu0 %v966
        %v1491 = vpop.f32.mrf.mxu0
        %v1492 = vadd.f32 0.0, %v1491
        %1493 = vmatmul.f32.gmra.mxu0 %v968
        %v1494 = vpop.f32.mrf.mxu0
        %v1495 = vadd.f32 0.0, %v1494
        %1496 = vmatmul.f32.gmra.mxu0 %v970
        %v1497 = vpop.f32.mrf.mxu0
        %v1498 = vadd.f32 0.0, %v1497
        %1499 = vmatmul.f32.gmra.mxu0 %v972
        %v1500 = vpop.f32.mrf.mxu0
        %v1501 = vadd.f32 0.0, %v1500
        %1502 = vmatmul.f32.gmra.mxu0 %v1388
        %v1503 = vpop.f32.mrf.mxu0
        %v1504 = vadd.f32 0.0, %v1503
        %1505 = vmatmul.f32.gmra.mxu0 %v1391
        %v1506 = vpop.f32.mrf.mxu0
        %v1507 = vadd.f32 0.0, %v1506
        %1508 = vdwg.mxu0
        %v1509 = vadd.f32 %v1353, %v1414
        %v1510 = vadd.f32 %v1354, %v1417
        %v1511 = vadd.f32 %v1355, %v1420
        %v1512 = vadd.f32 %v1356, %v1423
        %v1513 = vadd.f32 %v1357, %v1426
        %v1514 = vadd.f32 %v1358, %v1429
        %v1515 = vadd.f32 %v1359, %v1432
        %v1516 = vadd.f32 %v1360, %v1435
        %v1517 = vadd.f32 %v1361, %v1438
        %v1518 = vadd.f32 %v1362, %v1441
        %v1519 = vadd.f32 %v1363, %v1444
        %v1520 = vadd.f32 %v1364, %v1447
        %v1521 = vadd.f32 %v1365, %v1450
        %v1522 = vadd.f32 %v1366, %v1453
        %v1523 = vadd.f32 %v1367, %v1456
        %v1524 = vadd.f32 %v1368, %v1459
        %v1525 = vadd.f32 %v1369, %v1462
        %v1526 = vadd.f32 %v1370, %v1465
        %v1527 = vadd.f32 %v1371, %v1468
        %v1528 = vadd.f32 %v1372, %v1471
        %v1529 = vadd.f32 %v1373, %v1474
        %v1530 = vadd.f32 %v1374, %v1477
        %v1531 = vadd.f32 %v1375, %v1480
        %v1532 = vadd.f32 %v1376, %v1483
        %v1533 = vadd.f32 %v1377, %v1486
        %v1534 = vadd.f32 %v1378, %v1489
        %v1535 = vadd.f32 %v1379, %v1492
        %v1536 = vadd.f32 %v1380, %v1495
        %v1537 = vadd.f32 %v1381, %v1498
        %v1538 = vadd.f32 %v1382, %v1501
        %v1539 = vadd.f32 %v1383, %v1504
        %v1540 = vadd.f32 %v1384, %v1507
        %v1542 = vrot.slane %v590, 1
        %v1543 = vrot.slane %v591, 1
        %v1544 = vsel %vm645, %v1542, %v1543
        %v1545 = vrot.slane %v592, 1
        %v1546 = vsel %vm645, %v1543, %v1545
        %s1547 = scalar_lea.vmem %s2, 16
        %v1548 = vld [vmem:[%s1547] sm:$0xf]
        %v1549 = vsel %vm728, %v1544, 0
        %v1551 = vsel %vm728, %v1546, 0
        %v1554 = vsel %vm793, %v1548, 0
        %1556 = vmatpush.msra.mxu0 0.0
        %1557 = vmatpush.msra.mxu0 0.0
        %1558 = vmatpush.msra.mxu0 0.0
        %1559 = vmatpush.msra.mxu0 0.0
        %1560 = vmatpush.msra.mxu0 0.0
        %1561 = vmatpush.msra.mxu0 0.0
        %1562 = vmatpush.msra.mxu0 0.0
        %1563 = vmatpush.msra.mxu0 0.0
        %1564 = vmatpush.msra.mxu0 0.0
        %1565 = vmatpush.msra.mxu0 0.0
        %1566 = vmatpush.msra.mxu0 0.0
        %1567 = vmatpush.msra.mxu0 0.0
        %1568 = vmatpush.msra.mxu0 0.0
        %1569 = vmatpush.msra.mxu0 0.0
        %1570 = vmatpush.msra.mxu0 0.0
        %1571 = vmatpush.msra.mxu0 %v1554
        %1572 = vmatmul.f32.gmra.mxu0 %v733
        %v1573 = vpop.f32.mrf.mxu0
        %v1574 = vadd.f32 0.0, %v1573
        %1575 = vmatmul.f32.gmra.mxu0 %v735
        %v1576 = vpop.f32.mrf.mxu0
        %v1577 = vadd.f32 0.0, %v1576
        %1578 = vmatmul.f32.gmra.mxu0 %v737
        %v1579 = vpop.f32.mrf.mxu0
        %v1580 = vadd.f32 0.0, %v1579
        %1581 = vmatmul.f32.gmra.mxu0 %v739
        %v1582 = vpop.f32.mrf.mxu0
        %v1583 = vadd.f32 0.0, %v1582
        %1584 = vmatmul.f32.gmra.mxu0 %v741
        %v1585 = vpop.f32.mrf.mxu0
        %v1586 = vadd.f32 0.0, %v1585
        %1587 = vmatmul.f32.gmra.mxu0 %v743
        %v1588 = vpop.f32.mrf.mxu0
        %v1589 = vadd.f32 0.0, %v1588
        %1590 = vmatmul.f32.gmra.mxu0 %v745
        %v1591 = vpop.f32.mrf.mxu0
        %v1592 = vadd.f32 0.0, %v1591
        %1593 = vmatmul.f32.gmra.mxu0 %v747
        %v1594 = vpop.f32.mrf.mxu0
        %v1595 = vadd.f32 0.0, %v1594
        %1596 = vmatmul.f32.gmra.mxu0 %v749
        %v1597 = vpop.f32.mrf.mxu0
        %v1598 = vadd.f32 0.0, %v1597
        %1599 = vmatmul.f32.gmra.mxu0 %v751
        %v1600 = vpop.f32.mrf.mxu0
        %v1601 = vadd.f32 0.0, %v1600
        %1602 = vmatmul.f32.gmra.mxu0 %v753
        %v1603 = vpop.f32.mrf.mxu0
        %v1604 = vadd.f32 0.0, %v1603
        %1605 = vmatmul.f32.gmra.mxu0 %v755
        %v1606 = vpop.f32.mrf.mxu0
        %v1607 = vadd.f32 0.0, %v1606
        %1608 = vmatmul.f32.gmra.mxu0 %v757
        %v1609 = vpop.f32.mrf.mxu0
        %v1610 = vadd.f32 0.0, %v1609
        %1611 = vmatmul.f32.gmra.mxu0 %v759
        %v1612 = vpop.f32.mrf.mxu0
        %v1613 = vadd.f32 0.0, %v1612
        %1614 = vmatmul.f32.gmra.mxu0 %v761
        %v1615 = vpop.f32.mrf.mxu0
        %v1616 = vadd.f32 0.0, %v1615
        %1617 = vmatmul.f32.gmra.mxu0 %v763
        %v1618 = vpop.f32.mrf.mxu0
        %v1619 = vadd.f32 0.0, %v1618
        %1620 = vmatmul.f32.gmra.mxu0 %v765
        %v1621 = vpop.f32.mrf.mxu0
        %v1622 = vadd.f32 0.0, %v1621
        %1623 = vmatmul.f32.gmra.mxu0 %v767
        %v1624 = vpop.f32.mrf.mxu0
        %v1625 = vadd.f32 0.0, %v1624
        %1626 = vmatmul.f32.gmra.mxu0 %v769
        %v1627 = vpop.f32.mrf.mxu0
        %v1628 = vadd.f32 0.0, %v1627
        %1629 = vmatmul.f32.gmra.mxu0 %v771
        %v1630 = vpop.f32.mrf.mxu0
        %v1631 = vadd.f32 0.0, %v1630
        %1632 = vmatmul.f32.gmra.mxu0 %v773
        %v1633 = vpop.f32.mrf.mxu0
        %v1634 = vadd.f32 0.0, %v1633
        %1635 = vmatmul.f32.gmra.mxu0 %v775
        %v1636 = vpop.f32.mrf.mxu0
        %v1637 = vadd.f32 0.0, %v1636
        %1638 = vmatmul.f32.gmra.mxu0 %v777
        %v1639 = vpop.f32.mrf.mxu0
        %v1640 = vadd.f32 0.0, %v1639
        %1641 = vmatmul.f32.gmra.mxu0 %v779
        %v1642 = vpop.f32.mrf.mxu0
        %v1643 = vadd.f32 0.0, %v1642
        %1644 = vmatmul.f32.gmra.mxu0 %v781
        %v1645 = vpop.f32.mrf.mxu0
        %v1646 = vadd.f32 0.0, %v1645
        %1647 = vmatmul.f32.gmra.mxu0 %v783
        %v1648 = vpop.f32.mrf.mxu0
        %v1649 = vadd.f32 0.0, %v1648
        %1650 = vmatmul.f32.gmra.mxu0 %v785
        %v1651 = vpop.f32.mrf.mxu0
        %v1652 = vadd.f32 0.0, %v1651
        %1653 = vmatmul.f32.gmra.mxu0 %v787
        %v1654 = vpop.f32.mrf.mxu0
        %v1655 = vadd.f32 0.0, %v1654
        %1656 = vmatmul.f32.gmra.mxu0 %v789
        %v1657 = vpop.f32.mrf.mxu0
        %v1658 = vadd.f32 0.0, %v1657
        %1659 = vmatmul.f32.gmra.mxu0 %v791
        %v1660 = vpop.f32.mrf.mxu0
        %v1661 = vadd.f32 0.0, %v1660
        %1662 = vmatmul.f32.gmra.mxu0 %v1549
        %v1663 = vpop.f32.mrf.mxu0
        %v1664 = vadd.f32 0.0, %v1663
        %1665 = vmatmul.f32.gmra.mxu0 %v1551
        %v1666 = vpop.f32.mrf.mxu0
        %v1667 = vadd.f32 0.0, %v1666
        %1668 = vdwg.mxu0
        %v1669 = vadd.f32 %v1509, %v1574
        %v1670 = vadd.f32 %v1510, %v1577
        %v1671 = vadd.f32 %v1511, %v1580
        %v1672 = vadd.f32 %v1512, %v1583
        %v1673 = vadd.f32 %v1513, %v1586
        %v1674 = vadd.f32 %v1514, %v1589
        %v1675 = vadd.f32 %v1515, %v1592
        %v1676 = vadd.f32 %v1516, %v1595
        %v1677 = vadd.f32 %v1517, %v1598
        %v1678 = vadd.f32 %v1518, %v1601
        %v1679 = vadd.f32 %v1519, %v1604
        %v1680 = vadd.f32 %v1520, %v1607
        %v1681 = vadd.f32 %v1521, %v1610
        %v1682 = vadd.f32 %v1522, %v1613
        %v1683 = vadd.f32 %v1523, %v1616
        %v1684 = vadd.f32 %v1524, %v1619
        %v1685 = vadd.f32 %v1525, %v1622
        %v1686 = vadd.f32 %v1526, %v1625
        %v1687 = vadd.f32 %v1527, %v1628
        %v1688 = vadd.f32 %v1528, %v1631
        %v1689 = vadd.f32 %v1529, %v1634
        %v1690 = vadd.f32 %v1530, %v1637
        %v1691 = vadd.f32 %v1531, %v1640
        %v1692 = vadd.f32 %v1532, %v1643
        %v1693 = vadd.f32 %v1533, %v1646
        %v1694 = vadd.f32 %v1534, %v1649
        %v1695 = vadd.f32 %v1535, %v1652
        %v1696 = vadd.f32 %v1536, %v1655
        %v1697 = vadd.f32 %v1537, %v1658
        %v1698 = vadd.f32 %v1538, %v1661
        %v1699 = vadd.f32 %v1539, %v1664
        %v1700 = vadd.f32 %v1540, %v1667
        %v1701 = vrot.slane %v590, 2
        %v1702 = vrot.slane %v591, 2
        %v1703 = vsel %vm1090, %v1701, %v1702
        %v1704 = vrot.slane %v592, 2
        %v1705 = vsel %vm1090, %v1702, %v1704
        %s1706 = scalar_lea.vmem %s2, 20
        %v1707 = vld [vmem:[%s1706] sm:$0xf]
        %v1708 = vsel %vm728, %v1703, 0
        %v1710 = vsel %vm728, %v1705, 0
        %v1713 = vsel %vm793, %v1707, 0
        %1715 = vmatpush.msra.mxu0 0.0
        %1716 = vmatpush.msra.mxu0 0.0
        %1717 = vmatpush.msra.mxu0 0.0
        %1718 = vmatpush.msra.mxu0 0.0
        %1719 = vmatpush.msra.mxu0 0.0
        %1720 = vmatpush.msra.mxu0 0.0
        %1721 = vmatpush.msra.mxu0 0.0
        %1722 = vmatpush.msra.mxu0 0.0
        %1723 = vmatpush.msra.mxu0 0.0
        %1724 = vmatpush.msra.mxu0 0.0
        %1725 = vmatpush.msra.mxu0 0.0
        %1726 = vmatpush.msra.mxu0 0.0
        %1727 = vmatpush.msra.mxu0 0.0
        %1728 = vmatpush.msra.mxu0 0.0
        %1729 = vmatpush.msra.mxu0 0.0
        %1730 = vmatpush.msra.mxu0 %v1713
        %1731 = vmatmul.f32.gmra.mxu0 %v1177
        %v1732 = vpop.f32.mrf.mxu0
        %v1733 = vadd.f32 0.0, %v1732
        %1734 = vmatmul.f32.gmra.mxu0 %v1179
        %v1735 = vpop.f32.mrf.mxu0
        %v1736 = vadd.f32 0.0, %v1735
        %1737 = vmatmul.f32.gmra.mxu0 %v1181
        %v1738 = vpop.f32.mrf.mxu0
        %v1739 = vadd.f32 0.0, %v1738
        %1740 = vmatmul.f32.gmra.mxu0 %v1183
        %v1741 = vpop.f32.mrf.mxu0
        %v1742 = vadd.f32 0.0, %v1741
        %1743 = vmatmul.f32.gmra.mxu0 %v1185
        %v1744 = vpop.f32.mrf.mxu0
        %v1745 = vadd.f32 0.0, %v1744
        %1746 = vmatmul.f32.gmra.mxu0 %v1187
        %v1747 = vpop.f32.mrf.mxu0
        %v1748 = vadd.f32 0.0, %v1747
        %1749 = vmatmul.f32.gmra.mxu0 %v1189
        %v1750 = vpop.f32.mrf.mxu0
        %v1751 = vadd.f32 0.0, %v1750
        %1752 = vmatmul.f32.gmra.mxu0 %v1191
        %v1753 = vpop.f32.mrf.mxu0
        %v1754 = vadd.f32 0.0, %v1753
        %1755 = vmatmul.f32.gmra.mxu0 %v1193
        %v1756 = vpop.f32.mrf.mxu0
        %v1757 = vadd.f32 0.0, %v1756
        %1758 = vmatmul.f32.gmra.mxu0 %v1195
        %v1759 = vpop.f32.mrf.mxu0
        %v1760 = vadd.f32 0.0, %v1759
        %1761 = vmatmul.f32.gmra.mxu0 %v1197
        %v1762 = vpop.f32.mrf.mxu0
        %v1763 = vadd.f32 0.0, %v1762
        %1764 = vmatmul.f32.gmra.mxu0 %v1199
        %v1765 = vpop.f32.mrf.mxu0
        %v1766 = vadd.f32 0.0, %v1765
        %1767 = vmatmul.f32.gmra.mxu0 %v1201
        %v1768 = vpop.f32.mrf.mxu0
        %v1769 = vadd.f32 0.0, %v1768
        %1770 = vmatmul.f32.gmra.mxu0 %v1203
        %v1771 = vpop.f32.mrf.mxu0
        %v1772 = vadd.f32 0.0, %v1771
        %1773 = vmatmul.f32.gmra.mxu0 %v1205
        %v1774 = vpop.f32.mrf.mxu0
        %v1775 = vadd.f32 0.0, %v1774
        %1776 = vmatmul.f32.gmra.mxu0 %v1207
        %v1777 = vpop.f32.mrf.mxu0
        %v1778 = vadd.f32 0.0, %v1777
        %1779 = vmatmul.f32.gmra.mxu0 %v1209
        %v1780 = vpop.f32.mrf.mxu0
        %v1781 = vadd.f32 0.0, %v1780
        %1782 = vmatmul.f32.gmra.mxu0 %v1211
        %v1783 = vpop.f32.mrf.mxu0
        %v1784 = vadd.f32 0.0, %v1783
        %1785 = vmatmul.f32.gmra.mxu0 %v1213
        %v1786 = vpop.f32.mrf.mxu0
        %v1787 = vadd.f32 0.0, %v1786
        %1788 = vmatmul.f32.gmra.mxu0 %v1215
        %v1789 = vpop.f32.mrf.mxu0
        %v1790 = vadd.f32 0.0, %v1789
        %1791 = vmatmul.f32.gmra.mxu0 %v1217
        %v1792 = vpop.f32.mrf.mxu0
        %v1793 = vadd.f32 0.0, %v1792
        %1794 = vmatmul.f32.gmra.mxu0 %v1219
        %v1795 = vpop.f32.mrf.mxu0
        %v1796 = vadd.f32 0.0, %v1795
        %1797 = vmatmul.f32.gmra.mxu0 %v1221
        %v1798 = vpop.f32.mrf.mxu0
        %v1799 = vadd.f32 0.0, %v1798
        %1800 = vmatmul.f32.gmra.mxu0 %v1223
        %v1801 = vpop.f32.mrf.mxu0
        %v1802 = vadd.f32 0.0, %v1801
        %1803 = vmatmul.f32.gmra.mxu0 %v1225
        %v1804 = vpop.f32.mrf.mxu0
        %v1805 = vadd.f32 0.0, %v1804
        %1806 = vmatmul.f32.gmra.mxu0 %v1227
        %v1807 = vpop.f32.mrf.mxu0
        %v1808 = vadd.f32 0.0, %v1807
        %1809 = vmatmul.f32.gmra.mxu0 %v1229
        %v1810 = vpop.f32.mrf.mxu0
        %v1811 = vadd.f32 0.0, %v1810
        %1812 = vmatmul.f32.gmra.mxu0 %v1231
        %v1813 = vpop.f32.mrf.mxu0
        %v1814 = vadd.f32 0.0, %v1813
        %1815 = vmatmul.f32.gmra.mxu0 %v1233
        %v1816 = vpop.f32.mrf.mxu0
        %v1817 = vadd.f32 0.0, %v1816
        %1818 = vmatmul.f32.gmra.mxu0 %v1235
        %v1819 = vpop.f32.mrf.mxu0
        %v1820 = vadd.f32 0.0, %v1819
        %1821 = vmatmul.f32.gmra.mxu0 %v1708
        %v1822 = vpop.f32.mrf.mxu0
        %v1823 = vadd.f32 0.0, %v1822
        %1824 = vmatmul.f32.gmra.mxu0 %v1710
        %v1825 = vpop.f32.mrf.mxu0
        %v1826 = vadd.f32 0.0, %v1825
        %1827 = vdwg.mxu0
        %v1828 = vadd.f32 %v1669, %v1733
        %v1829 = vadd.f32 %v1670, %v1736
        %v1830 = vadd.f32 %v1671, %v1739
        %v1831 = vadd.f32 %v1672, %v1742
        %v1832 = vadd.f32 %v1673, %v1745
        %v1833 = vadd.f32 %v1674, %v1748
        %v1834 = vadd.f32 %v1675, %v1751
        %v1835 = vadd.f32 %v1676, %v1754
        %v1836 = vadd.f32 %v1677, %v1757
        %v1837 = vadd.f32 %v1678, %v1760
        %v1838 = vadd.f32 %v1679, %v1763
        %v1839 = vadd.f32 %v1680, %v1766
        %v1840 = vadd.f32 %v1681, %v1769
        %v1841 = vadd.f32 %v1682, %v1772
        %v1842 = vadd.f32 %v1683, %v1775
        %v1843 = vadd.f32 %v1684, %v1778
        %v1844 = vadd.f32 %v1685, %v1781
        %v1845 = vadd.f32 %v1686, %v1784
        %v1846 = vadd.f32 %v1687, %v1787
        %v1847 = vadd.f32 %v1688, %v1790
        %v1848 = vadd.f32 %v1689, %v1793
        %v1849 = vadd.f32 %v1690, %v1796
        %v1850 = vadd.f32 %v1691, %v1799
        %v1851 = vadd.f32 %v1692, %v1802
        %v1852 = vadd.f32 %v1693, %v1805
        %v1853 = vadd.f32 %v1694, %v1808
        %v1854 = vadd.f32 %v1695, %v1811
        %v1855 = vadd.f32 %v1696, %v1814
        %v1856 = vadd.f32 %v1697, %v1817
        %v1857 = vadd.f32 %v1698, %v1820
        %v1858 = vadd.f32 %v1699, %v1823
        %v1859 = vadd.f32 %v1700, %v1826
        %s1860 = scalar_lea.vmem %s2, 24
        %v1861 = vld [vmem:[%s1860] sm:$0xf]
        %v1863 = vsel %vm728, %v593, 0
        %v1866 = vsel %vm728, %v594, 0
        %v1869 = vsel %vm793, %v1861, 0
        %1871 = vmatpush.msra.mxu0 0.0
        %1872 = vmatpush.msra.mxu0 0.0
        %1873 = vmatpush.msra.mxu0 0.0
        %1874 = vmatpush.msra.mxu0 0.0
        %1875 = vmatpush.msra.mxu0 0.0
        %1876 = vmatpush.msra.mxu0 0.0
        %1877 = vmatpush.msra.mxu0 0.0
        %1878 = vmatpush.msra.mxu0 0.0
        %1879 = vmatpush.msra.mxu0 0.0
        %1880 = vmatpush.msra.mxu0 0.0
        %1881 = vmatpush.msra.mxu0 0.0
        %1882 = vmatpush.msra.mxu0 0.0
        %1883 = vmatpush.msra.mxu0 0.0
        %1884 = vmatpush.msra.mxu0 0.0
        %1885 = vmatpush.msra.mxu0 0.0
        %1886 = vmatpush.msra.mxu0 %v1869
        %1887 = vmatmul.f32.gmra.mxu0 %v918
        %v1888 = vpop.f32.mrf.mxu0
        %v1889 = vadd.f32 0.0, %v1888
        %1890 = vmatmul.f32.gmra.mxu0 %v920
        %v1891 = vpop.f32.mrf.mxu0
        %v1892 = vadd.f32 0.0, %v1891
        %1893 = vmatmul.f32.gmra.mxu0 %v922
        %v1894 = vpop.f32.mrf.mxu0
        %v1895 = vadd.f32 0.0, %v1894
        %1896 = vmatmul.f32.gmra.mxu0 %v924
        %v1897 = vpop.f32.mrf.mxu0
        %v1898 = vadd.f32 0.0, %v1897
        %1899 = vmatmul.f32.gmra.mxu0 %v926
        %v1900 = vpop.f32.mrf.mxu0
        %v1901 = vadd.f32 0.0, %v1900
        %1902 = vmatmul.f32.gmra.mxu0 %v928
        %v1903 = vpop.f32.mrf.mxu0
        %v1904 = vadd.f32 0.0, %v1903
        %1905 = vmatmul.f32.gmra.mxu0 %v930
        %v1906 = vpop.f32.mrf.mxu0
        %v1907 = vadd.f32 0.0, %v1906
        %1908 = vmatmul.f32.gmra.mxu0 %v932
        %v1909 = vpop.f32.mrf.mxu0
        %v1910 = vadd.f32 0.0, %v1909
        %1911 = vmatmul.f32.gmra.mxu0 %v934
        %v1912 = vpop.f32.mrf.mxu0
        %v1913 = vadd.f32 0.0, %v1912
        %1914 = vmatmul.f32.gmra.mxu0 %v936
        %v1915 = vpop.f32.mrf.mxu0
        %v1916 = vadd.f32 0.0, %v1915
        %1917 = vmatmul.f32.gmra.mxu0 %v938
        %v1918 = vpop.f32.mrf.mxu0
        %v1919 = vadd.f32 0.0, %v1918
        %1920 = vmatmul.f32.gmra.mxu0 %v940
        %v1921 = vpop.f32.mrf.mxu0
        %v1922 = vadd.f32 0.0, %v1921
        %1923 = vmatmul.f32.gmra.mxu0 %v942
        %v1924 = vpop.f32.mrf.mxu0
        %v1925 = vadd.f32 0.0, %v1924
        %1926 = vmatmul.f32.gmra.mxu0 %v944
        %v1927 = vpop.f32.mrf.mxu0
        %v1928 = vadd.f32 0.0, %v1927
        %1929 = vmatmul.f32.gmra.mxu0 %v946
        %v1930 = vpop.f32.mrf.mxu0
        %v1931 = vadd.f32 0.0, %v1930
        %1932 = vmatmul.f32.gmra.mxu0 %v948
        %v1933 = vpop.f32.mrf.mxu0
        %v1934 = vadd.f32 0.0, %v1933
        %1935 = vmatmul.f32.gmra.mxu0 %v950
        %v1936 = vpop.f32.mrf.mxu0
        %v1937 = vadd.f32 0.0, %v1936
        %1938 = vmatmul.f32.gmra.mxu0 %v952
        %v1939 = vpop.f32.mrf.mxu0
        %v1940 = vadd.f32 0.0, %v1939
        %1941 = vmatmul.f32.gmra.mxu0 %v954
        %v1942 = vpop.f32.mrf.mxu0
        %v1943 = vadd.f32 0.0, %v1942
        %1944 = vmatmul.f32.gmra.mxu0 %v956
        %v1945 = vpop.f32.mrf.mxu0
        %v1946 = vadd.f32 0.0, %v1945
        %1947 = vmatmul.f32.gmra.mxu0 %v958
        %v1948 = vpop.f32.mrf.mxu0
        %v1949 = vadd.f32 0.0, %v1948
        %1950 = vmatmul.f32.gmra.mxu0 %v960
        %v1951 = vpop.f32.mrf.mxu0
        %v1952 = vadd.f32 0.0, %v1951
        %1953 = vmatmul.f32.gmra.mxu0 %v962
        %v1954 = vpop.f32.mrf.mxu0
        %v1955 = vadd.f32 0.0, %v1954
        %1956 = vmatmul.f32.gmra.mxu0 %v964
        %v1957 = vpop.f32.mrf.mxu0
        %v1958 = vadd.f32 0.0, %v1957
        %1959 = vmatmul.f32.gmra.mxu0 %v966
        %v1960 = vpop.f32.mrf.mxu0
        %v1961 = vadd.f32 0.0, %v1960
        %1962 = vmatmul.f32.gmra.mxu0 %v968
        %v1963 = vpop.f32.mrf.mxu0
        %v1964 = vadd.f32 0.0, %v1963
        %1965 = vmatmul.f32.gmra.mxu0 %v970
        %v1966 = vpop.f32.mrf.mxu0
        %v1967 = vadd.f32 0.0, %v1966
        %1968 = vmatmul.f32.gmra.mxu0 %v972
        %v1969 = vpop.f32.mrf.mxu0
        %v1970 = vadd.f32 0.0, %v1969
        %1971 = vmatmul.f32.gmra.mxu0 %v1388
        %v1972 = vpop.f32.mrf.mxu0
        %v1973 = vadd.f32 0.0, %v1972
        %1974 = vmatmul.f32.gmra.mxu0 %v1391
        %v1975 = vpop.f32.mrf.mxu0
        %v1976 = vadd.f32 0.0, %v1975
        %1977 = vmatmul.f32.gmra.mxu0 %v1863
        %v1978 = vpop.f32.mrf.mxu0
        %v1979 = vadd.f32 0.0, %v1978
        %1980 = vmatmul.f32.gmra.mxu0 %v1866
        %v1981 = vpop.f32.mrf.mxu0
        %v1982 = vadd.f32 0.0, %v1981
        %1983 = vdwg.mxu0
        %v1984 = vadd.f32 %v1828, %v1889
        %v1985 = vadd.f32 %v1829, %v1892
        %v1986 = vadd.f32 %v1830, %v1895
        %v1987 = vadd.f32 %v1831, %v1898
        %v1988 = vadd.f32 %v1832, %v1901
        %v1989 = vadd.f32 %v1833, %v1904
        %v1990 = vadd.f32 %v1834, %v1907
        %v1991 = vadd.f32 %v1835, %v1910
        %v1992 = vadd.f32 %v1836, %v1913
        %v1993 = vadd.f32 %v1837, %v1916
        %v1994 = vadd.f32 %v1838, %v1919
        %v1995 = vadd.f32 %v1839, %v1922
        %v1996 = vadd.f32 %v1840, %v1925
        %v1997 = vadd.f32 %v1841, %v1928
        %v1998 = vadd.f32 %v1842, %v1931
        %v1999 = vadd.f32 %v1843, %v1934
        %v2000 = vadd.f32 %v1844, %v1937
        %v2001 = vadd.f32 %v1845, %v1940
        %v2002 = vadd.f32 %v1846, %v1943
        %v2003 = vadd.f32 %v1847, %v1946
        %v2004 = vadd.f32 %v1848, %v1949
        %v2005 = vadd.f32 %v1849, %v1952
        %v2006 = vadd.f32 %v1850, %v1955
        %v2007 = vadd.f32 %v1851, %v1958
        %v2008 = vadd.f32 %v1852, %v1961
        %v2009 = vadd.f32 %v1853, %v1964
        %v2010 = vadd.f32 %v1854, %v1967
        %v2011 = vadd.f32 %v1855, %v1970
        %v2012 = vadd.f32 %v1856, %v1973
        %v2013 = vadd.f32 %v1857, %v1976
        %v2014 = vadd.f32 %v1858, %v1979
        %v2015 = vadd.f32 %v1859, %v1982
        %v2017 = vrot.slane %v593, 1
        %v2018 = vrot.slane %v594, 1
        %v2019 = vsel %vm645, %v2017, %v2018
        %v2020 = vrot.slane %v595, 1
        %v2021 = vsel %vm645, %v2018, %v2020
        %s2022 = scalar_lea.vmem %s2, 28
        %v2023 = vld [vmem:[%s2022] sm:$0xf]
        %v2024 = vsel %vm728, %v2019, 0
        %v2026 = vsel %vm728, %v2021, 0
        %v2029 = vsel %vm793, %v2023, 0
        %2031 = vmatpush.msra.mxu0 0.0
        %2032 = vmatpush.msra.mxu0 0.0
        %2033 = vmatpush.msra.mxu0 0.0
        %2034 = vmatpush.msra.mxu0 0.0
        %2035 = vmatpush.msra.mxu0 0.0
        %2036 = vmatpush.msra.mxu0 0.0
        %2037 = vmatpush.msra.mxu0 0.0
        %2038 = vmatpush.msra.mxu0 0.0
        %2039 = vmatpush.msra.mxu0 0.0
        %2040 = vmatpush.msra.mxu0 0.0
        %2041 = vmatpush.msra.mxu0 0.0
        %2042 = vmatpush.msra.mxu0 0.0
        %2043 = vmatpush.msra.mxu0 0.0
        %2044 = vmatpush.msra.mxu0 0.0
        %2045 = vmatpush.msra.mxu0 0.0
        %2046 = vmatpush.msra.mxu0 %v2029
        %2047 = vmatmul.f32.gmra.mxu0 %v737
        %v2048 = vpop.f32.mrf.mxu0
        %v2049 = vadd.f32 0.0, %v2048
        %2050 = vmatmul.f32.gmra.mxu0 %v739
        %v2051 = vpop.f32.mrf.mxu0
        %v2052 = vadd.f32 0.0, %v2051
        %2053 = vmatmul.f32.gmra.mxu0 %v741
        %v2054 = vpop.f32.mrf.mxu0
        %v2055 = vadd.f32 0.0, %v2054
        %2056 = vmatmul.f32.gmra.mxu0 %v743
        %v2057 = vpop.f32.mrf.mxu0
        %v2058 = vadd.f32 0.0, %v2057
        %2059 = vmatmul.f32.gmra.mxu0 %v745
        %v2060 = vpop.f32.mrf.mxu0
        %v2061 = vadd.f32 0.0, %v2060
        %2062 = vmatmul.f32.gmra.mxu0 %v747
        %v2063 = vpop.f32.mrf.mxu0
        %v2064 = vadd.f32 0.0, %v2063
        %2065 = vmatmul.f32.gmra.mxu0 %v749
        %v2066 = vpop.f32.mrf.mxu0
        %v2067 = vadd.f32 0.0, %v2066
        %2068 = vmatmul.f32.gmra.mxu0 %v751
        %v2069 = vpop.f32.mrf.mxu0
        %v2070 = vadd.f32 0.0, %v2069
        %2071 = vmatmul.f32.gmra.mxu0 %v753
        %v2072 = vpop.f32.mrf.mxu0
        %v2073 = vadd.f32 0.0, %v2072
        %2074 = vmatmul.f32.gmra.mxu0 %v755
        %v2075 = vpop.f32.mrf.mxu0
        %v2076 = vadd.f32 0.0, %v2075
        %2077 = vmatmul.f32.gmra.mxu0 %v757
        %v2078 = vpop.f32.mrf.mxu0
        %v2079 = vadd.f32 0.0, %v2078
        %2080 = vmatmul.f32.gmra.mxu0 %v759
        %v2081 = vpop.f32.mrf.mxu0
        %v2082 = vadd.f32 0.0, %v2081
        %2083 = vmatmul.f32.gmra.mxu0 %v761
        %v2084 = vpop.f32.mrf.mxu0
        %v2085 = vadd.f32 0.0, %v2084
        %2086 = vmatmul.f32.gmra.mxu0 %v763
        %v2087 = vpop.f32.mrf.mxu0
        %v2088 = vadd.f32 0.0, %v2087
        %2089 = vmatmul.f32.gmra.mxu0 %v765
        %v2090 = vpop.f32.mrf.mxu0
        %v2091 = vadd.f32 0.0, %v2090
        %2092 = vmatmul.f32.gmra.mxu0 %v767
        %v2093 = vpop.f32.mrf.mxu0
        %v2094 = vadd.f32 0.0, %v2093
        %2095 = vmatmul.f32.gmra.mxu0 %v769
        %v2096 = vpop.f32.mrf.mxu0
        %v2097 = vadd.f32 0.0, %v2096
        %2098 = vmatmul.f32.gmra.mxu0 %v771
        %v2099 = vpop.f32.mrf.mxu0
        %v2100 = vadd.f32 0.0, %v2099
        %2101 = vmatmul.f32.gmra.mxu0 %v773
        %v2102 = vpop.f32.mrf.mxu0
        %v2103 = vadd.f32 0.0, %v2102
        %2104 = vmatmul.f32.gmra.mxu0 %v775
        %v2105 = vpop.f32.mrf.mxu0
        %v2106 = vadd.f32 0.0, %v2105
        %2107 = vmatmul.f32.gmra.mxu0 %v777
        %v2108 = vpop.f32.mrf.mxu0
        %v2109 = vadd.f32 0.0, %v2108
        %2110 = vmatmul.f32.gmra.mxu0 %v779
        %v2111 = vpop.f32.mrf.mxu0
        %v2112 = vadd.f32 0.0, %v2111
        %2113 = vmatmul.f32.gmra.mxu0 %v781
        %v2114 = vpop.f32.mrf.mxu0
        %v2115 = vadd.f32 0.0, %v2114
        %2116 = vmatmul.f32.gmra.mxu0 %v783
        %v2117 = vpop.f32.mrf.mxu0
        %v2118 = vadd.f32 0.0, %v2117
        %2119 = vmatmul.f32.gmra.mxu0 %v785
        %v2120 = vpop.f32.mrf.mxu0
        %v2121 = vadd.f32 0.0, %v2120
        %2122 = vmatmul.f32.gmra.mxu0 %v787
        %v2123 = vpop.f32.mrf.mxu0
        %v2124 = vadd.f32 0.0, %v2123
        %2125 = vmatmul.f32.gmra.mxu0 %v789
        %v2126 = vpop.f32.mrf.mxu0
        %v2127 = vadd.f32 0.0, %v2126
        %2128 = vmatmul.f32.gmra.mxu0 %v791
        %v2129 = vpop.f32.mrf.mxu0
        %v2130 = vadd.f32 0.0, %v2129
        %2131 = vmatmul.f32.gmra.mxu0 %v1549
        %v2132 = vpop.f32.mrf.mxu0
        %v2133 = vadd.f32 0.0, %v2132
        %2134 = vmatmul.f32.gmra.mxu0 %v1551
        %v2135 = vpop.f32.mrf.mxu0
        %v2136 = vadd.f32 0.0, %v2135
        %2137 = vmatmul.f32.gmra.mxu0 %v2024
        %v2138 = vpop.f32.mrf.mxu0
        %v2139 = vadd.f32 0.0, %v2138
        %2140 = vmatmul.f32.gmra.mxu0 %v2026
        %v2141 = vpop.f32.mrf.mxu0
        %v2142 = vadd.f32 0.0, %v2141
        %2143 = vdwg.mxu0
        %v2144 = vadd.f32 %v1984, %v2049
        %v2145 = vadd.f32 %v1985, %v2052
        %v2146 = vadd.f32 %v1986, %v2055
        %v2147 = vadd.f32 %v1987, %v2058
        %v2148 = vadd.f32 %v1988, %v2061
        %v2149 = vadd.f32 %v1989, %v2064
        %v2150 = vadd.f32 %v1990, %v2067
        %v2151 = vadd.f32 %v1991, %v2070
        %v2152 = vadd.f32 %v1992, %v2073
        %v2153 = vadd.f32 %v1993, %v2076
        %v2154 = vadd.f32 %v1994, %v2079
        %v2155 = vadd.f32 %v1995, %v2082
        %v2156 = vadd.f32 %v1996, %v2085
        %v2157 = vadd.f32 %v1997, %v2088
        %v2158 = vadd.f32 %v1998, %v2091
        %v2159 = vadd.f32 %v1999, %v2094
        %v2160 = vadd.f32 %v2000, %v2097
        %v2161 = vadd.f32 %v2001, %v2100
        %v2162 = vadd.f32 %v2002, %v2103
        %v2163 = vadd.f32 %v2003, %v2106
        %v2164 = vadd.f32 %v2004, %v2109
        %v2165 = vadd.f32 %v2005, %v2112
        %v2166 = vadd.f32 %v2006, %v2115
        %v2167 = vadd.f32 %v2007, %v2118
        %v2168 = vadd.f32 %v2008, %v2121
        %v2169 = vadd.f32 %v2009, %v2124
        %v2170 = vadd.f32 %v2010, %v2127
        %v2171 = vadd.f32 %v2011, %v2130
        %v2172 = vadd.f32 %v2012, %v2133
        %v2173 = vadd.f32 %v2013, %v2136
        %v2174 = vadd.f32 %v2014, %v2139
        %v2175 = vadd.f32 %v2015, %v2142
        %v2176 = vrot.slane %v593, 2
        %v2177 = vrot.slane %v594, 2
        %v2178 = vsel %vm1090, %v2176, %v2177
        %v2179 = vrot.slane %v595, 2
        %v2180 = vsel %vm1090, %v2177, %v2179
        %s2181 = scalar_lea.vmem %s2, 32
        %v2182 = vld [vmem:[%s2181] sm:$0xf]
        %v2183 = vsel %vm728, %v2178, 0
        %v2185 = vsel %vm728, %v2180, 0
        %v2188 = vsel %vm793, %v2182, 0
        %2190 = vmatpush.msra.mxu0 0.0
        %2191 = vmatpush.msra.mxu0 0.0
        %2192 = vmatpush.msra.mxu0 0.0
        %2193 = vmatpush.msra.mxu0 0.0
        %2194 = vmatpush.msra.mxu0 0.0
        %2195 = vmatpush.msra.mxu0 0.0
        %2196 = vmatpush.msra.mxu0 0.0
        %2197 = vmatpush.msra.mxu0 0.0
        %2198 = vmatpush.msra.mxu0 0.0
        %2199 = vmatpush.msra.mxu0 0.0
        %2200 = vmatpush.msra.mxu0 0.0
        %2201 = vmatpush.msra.mxu0 0.0
        %2202 = vmatpush.msra.mxu0 0.0
        %2203 = vmatpush.msra.mxu0 0.0
        %2204 = vmatpush.msra.mxu0 0.0
        %2205 = vmatpush.msra.mxu0 %v2188
        %2206 = vmatmul.f32.gmra.mxu0 %v1181
        %v2207 = vpop.f32.mrf.mxu0
        %v2208 = vadd.f32 0.0, %v2207
        %2209 = vmatmul.f32.gmra.mxu0 %v1183
        %v2210 = vpop.f32.mrf.mxu0
        %v2211 = vadd.f32 0.0, %v2210
        %2212 = vmatmul.f32.gmra.mxu0 %v1185
        %v2213 = vpop.f32.mrf.mxu0
        %v2214 = vadd.f32 0.0, %v2213
        %2215 = vmatmul.f32.gmra.mxu0 %v1187
        %v2216 = vpop.f32.mrf.mxu0
        %v2217 = vadd.f32 0.0, %v2216
        %2218 = vmatmul.f32.gmra.mxu0 %v1189
        %v2219 = vpop.f32.mrf.mxu0
        %v2220 = vadd.f32 0.0, %v2219
        %2221 = vmatmul.f32.gmra.mxu0 %v1191
        %v2222 = vpop.f32.mrf.mxu0
        %v2223 = vadd.f32 0.0, %v2222
        %2224 = vmatmul.f32.gmra.mxu0 %v1193
        %v2225 = vpop.f32.mrf.mxu0
        %v2226 = vadd.f32 0.0, %v2225
        %2227 = vmatmul.f32.gmra.mxu0 %v1195
        %v2228 = vpop.f32.mrf.mxu0
        %v2229 = vadd.f32 0.0, %v2228
        %2230 = vmatmul.f32.gmra.mxu0 %v1197
        %v2231 = vpop.f32.mrf.mxu0
        %v2232 = vadd.f32 0.0, %v2231
        %2233 = vmatmul.f32.gmra.mxu0 %v1199
        %v2234 = vpop.f32.mrf.mxu0
        %v2235 = vadd.f32 0.0, %v2234
        %2236 = vmatmul.f32.gmra.mxu0 %v1201
        %v2237 = vpop.f32.mrf.mxu0
        %v2238 = vadd.f32 0.0, %v2237
        %2239 = vmatmul.f32.gmra.mxu0 %v1203
        %v2240 = vpop.f32.mrf.mxu0
        %v2241 = vadd.f32 0.0, %v2240
        %2242 = vmatmul.f32.gmra.mxu0 %v1205
        %v2243 = vpop.f32.mrf.mxu0
        %v2244 = vadd.f32 0.0, %v2243
        %2245 = vmatmul.f32.gmra.mxu0 %v1207
        %v2246 = vpop.f32.mrf.mxu0
        %v2247 = vadd.f32 0.0, %v2246
        %2248 = vmatmul.f32.gmra.mxu0 %v1209
        %v2249 = vpop.f32.mrf.mxu0
        %v2250 = vadd.f32 0.0, %v2249
        %2251 = vmatmul.f32.gmra.mxu0 %v1211
        %v2252 = vpop.f32.mrf.mxu0
        %v2253 = vadd.f32 0.0, %v2252
        %2254 = vmatmul.f32.gmra.mxu0 %v1213
        %v2255 = vpop.f32.mrf.mxu0
        %v2256 = vadd.f32 0.0, %v2255
        %2257 = vmatmul.f32.gmra.mxu0 %v1215
        %v2258 = vpop.f32.mrf.mxu0
        %v2259 = vadd.f32 0.0, %v2258
        %2260 = vmatmul.f32.gmra.mxu0 %v1217
        %v2261 = vpop.f32.mrf.mxu0
        %v2262 = vadd.f32 0.0, %v2261
        %2263 = vmatmul.f32.gmra.mxu0 %v1219
        %v2264 = vpop.f32.mrf.mxu0
        %v2265 = vadd.f32 0.0, %v2264
        %2266 = vmatmul.f32.gmra.mxu0 %v1221
        %v2267 = vpop.f32.mrf.mxu0
        %v2268 = vadd.f32 0.0, %v2267
        %2269 = vmatmul.f32.gmra.mxu0 %v1223
        %v2270 = vpop.f32.mrf.mxu0
        %v2271 = vadd.f32 0.0, %v2270
        %2272 = vmatmul.f32.gmra.mxu0 %v1225
        %v2273 = vpop.f32.mrf.mxu0
        %v2274 = vadd.f32 0.0, %v2273
        %2275 = vmatmul.f32.gmra.mxu0 %v1227
        %v2276 = vpop.f32.mrf.mxu0
        %v2277 = vadd.f32 0.0, %v2276
        %2278 = vmatmul.f32.gmra.mxu0 %v1229
        %v2279 = vpop.f32.mrf.mxu0
        %v2280 = vadd.f32 0.0, %v2279
        %2281 = vmatmul.f32.gmra.mxu0 %v1231
        %v2282 = vpop.f32.mrf.mxu0
        %v2283 = vadd.f32 0.0, %v2282
        %2284 = vmatmul.f32.gmra.mxu0 %v1233
        %v2285 = vpop.f32.mrf.mxu0
        %v2286 = vadd.f32 0.0, %v2285
        %2287 = vmatmul.f32.gmra.mxu0 %v1235
        %v2288 = vpop.f32.mrf.mxu0
        %v2289 = vadd.f32 0.0, %v2288
        %2290 = vmatmul.f32.gmra.mxu0 %v1708
        %v2291 = vpop.f32.mrf.mxu0
        %v2292 = vadd.f32 0.0, %v2291
        %2293 = vmatmul.f32.gmra.mxu0 %v1710
        %v2294 = vpop.f32.mrf.mxu0
        %v2295 = vadd.f32 0.0, %v2294
        %2296 = vmatmul.f32.gmra.mxu0 %v2183
        %v2297 = vpop.f32.mrf.mxu0
        %v2298 = vadd.f32 0.0, %v2297
        %2299 = vmatmul.f32.gmra.mxu0 %v2185
        %v2300 = vpop.f32.mrf.mxu0
        %v2301 = vadd.f32 0.0, %v2300
        %2302 = vdwg.mxu0
        %v2303 = vadd.f32 %v2144, %v2208
        %v2304 = vadd.f32 %v2145, %v2211
        %v2305 = vadd.f32 %v2146, %v2214
        %v2306 = vadd.f32 %v2147, %v2217
        %v2307 = vadd.f32 %v2148, %v2220
        %v2308 = vadd.f32 %v2149, %v2223
        %v2309 = vadd.f32 %v2150, %v2226
        %v2310 = vadd.f32 %v2151, %v2229
        %v2311 = vadd.f32 %v2152, %v2232
        %v2312 = vadd.f32 %v2153, %v2235
        %v2313 = vadd.f32 %v2154, %v2238
        %v2314 = vadd.f32 %v2155, %v2241
        %v2315 = vadd.f32 %v2156, %v2244
        %v2316 = vadd.f32 %v2157, %v2247
        %v2317 = vadd.f32 %v2158, %v2250
        %v2318 = vadd.f32 %v2159, %v2253
        %v2319 = vadd.f32 %v2160, %v2256
        %v2320 = vadd.f32 %v2161, %v2259
        %v2321 = vadd.f32 %v2162, %v2262
        %v2322 = vadd.f32 %v2163, %v2265
        %v2323 = vadd.f32 %v2164, %v2268
        %v2324 = vadd.f32 %v2165, %v2271
        %v2325 = vadd.f32 %v2166, %v2274
        %v2326 = vadd.f32 %v2167, %v2277
        %v2327 = vadd.f32 %v2168, %v2280
        %v2328 = vadd.f32 %v2169, %v2283
        %v2329 = vadd.f32 %v2170, %v2286
        %v2330 = vadd.f32 %v2171, %v2289
        %v2331 = vadd.f32 %v2172, %v2292
        %v2332 = vadd.f32 %v2173, %v2295
        %v2333 = vadd.f32 %v2174, %v2298
        %v2334 = vadd.f32 %v2175, %v2301
        %v2335 = vld [vmem:[%s3] sm:$0x1]
        %v2337 = vperm.slane %v2335, 0
        %v2339 = vadd.f32 %v2303, %v2337
        %v2340 = vadd.f32 %v2304, %v2337
        %v2341 = vadd.f32 %v2305, %v2337
        %v2342 = vadd.f32 %v2306, %v2337
        %v2343 = vadd.f32 %v2307, %v2337
        %v2344 = vadd.f32 %v2308, %v2337
        %v2345 = vadd.f32 %v2309, %v2337
        %v2346 = vadd.f32 %v2310, %v2337
        %v2347 = vadd.f32 %v2311, %v2337
        %v2348 = vadd.f32 %v2312, %v2337
        %v2349 = vadd.f32 %v2313, %v2337
        %v2350 = vadd.f32 %v2314, %v2337
        %v2351 = vadd.f32 %v2315, %v2337
        %v2352 = vadd.f32 %v2316, %v2337
        %v2353 = vadd.f32 %v2317, %v2337
        %v2354 = vadd.f32 %v2318, %v2337
        %v2355 = vadd.f32 %v2319, %v2337
        %v2356 = vadd.f32 %v2320, %v2337
        %v2357 = vadd.f32 %v2321, %v2337
        %v2358 = vadd.f32 %v2322, %v2337
        %v2359 = vadd.f32 %v2323, %v2337
        %v2360 = vadd.f32 %v2324, %v2337
        %v2361 = vadd.f32 %v2325, %v2337
        %v2362 = vadd.f32 %v2326, %v2337
        %v2363 = vadd.f32 %v2327, %v2337
        %v2364 = vadd.f32 %v2328, %v2337
        %v2365 = vadd.f32 %v2329, %v2337
        %v2366 = vadd.f32 %v2330, %v2337
        %v2367 = vadd.f32 %v2331, %v2337
        %v2368 = vadd.f32 %v2332, %v2337
        %v2369 = vadd.f32 %v2333, %v2337
        %v2370 = vadd.f32 %v2334, %v2337
        %vm2371 = vcmask 64512
        %v2372 = vsel %vm2371, %v2339, 0.0
        %v2373 = vsel %vm2371, %v2340, 0.0
        %v2374 = vadd.f32 %v2372, %v2373
        %v2375 = vsel %vm2371, %v2341, 0.0
        %v2376 = vadd.f32 %v2374, %v2375
        %v2377 = vsel %vm2371, %v2342, 0.0
        %v2378 = vadd.f32 %v2376, %v2377
        %v2379 = vsel %vm2371, %v2343, 0.0
        %v2380 = vadd.f32 %v2378, %v2379
        %v2381 = vsel %vm2371, %v2344, 0.0
        %v2382 = vadd.f32 %v2380, %v2381
        %v2383 = vsel %vm2371, %v2345, 0.0
        %v2384 = vadd.f32 %v2382, %v2383
        %v2385 = vsel %vm2371, %v2346, 0.0
        %v2386 = vadd.f32 %v2384, %v2385
        %v2387 = vsel %vm2371, %v2347, 0.0
        %v2388 = vadd.f32 %v2386, %v2387
        %v2389 = vsel %vm2371, %v2348, 0.0
        %v2390 = vadd.f32 %v2388, %v2389
        %v2391 = vsel %vm2371, %v2349, 0.0
        %v2392 = vadd.f32 %v2390, %v2391
        %v2393 = vsel %vm2371, %v2350, 0.0
        %v2394 = vadd.f32 %v2392, %v2393
        %v2395 = vsel %vm2371, %v2351, 0.0
        %v2396 = vadd.f32 %v2394, %v2395
        %v2397 = vsel %vm2371, %v2352, 0.0
        %v2398 = vadd.f32 %v2396, %v2397
        %v2399 = vsel %vm2371, %v2353, 0.0
        %v2400 = vadd.f32 %v2398, %v2399
        %v2401 = vsel %vm2371, %v2354, 0.0
        %v2402 = vadd.f32 %v2400, %v2401
        %v2403 = vsel %vm2371, %v2355, 0.0
        %v2404 = vadd.f32 %v2402, %v2403
        %v2405 = vsel %vm2371, %v2356, 0.0
        %v2406 = vadd.f32 %v2404, %v2405
        %v2407 = vsel %vm2371, %v2357, 0.0
        %v2408 = vadd.f32 %v2406, %v2407
        %v2409 = vsel %vm2371, %v2358, 0.0
        %v2410 = vadd.f32 %v2408, %v2409
        %v2411 = vsel %vm2371, %v2359, 0.0
        %v2412 = vadd.f32 %v2410, %v2411
        %v2413 = vsel %vm2371, %v2360, 0.0
        %v2414 = vadd.f32 %v2412, %v2413
        %v2415 = vsel %vm2371, %v2361, 0.0
        %v2416 = vadd.f32 %v2414, %v2415
        %v2417 = vsel %vm2371, %v2362, 0.0
        %v2418 = vadd.f32 %v2416, %v2417
        %v2419 = vsel %vm2371, %v2363, 0.0
        %v2420 = vadd.f32 %v2418, %v2419
        %v2421 = vsel %vm2371, %v2364, 0.0
        %v2422 = vadd.f32 %v2420, %v2421
        %v2423 = vsel %vm2371, %v2365, 0.0
        %v2424 = vadd.f32 %v2422, %v2423
        %v2425 = vsel %vm2371, %v2366, 0.0
        %v2426 = vadd.f32 %v2424, %v2425
        %v2427 = vsel %vm2371, %v2367, 0.0
        %v2428 = vadd.f32 %v2426, %v2427
        %v2429 = vsel %vm2371, %v2368, 0.0
        %v2430 = vadd.f32 %v2428, %v2429
        %v2431 = vsel %vm2371, %v2369, 0.0
        %v2432 = vadd.f32 %v2430, %v2431
        %v2433 = vsel %vm2371, %v2370, 0.0
        %v2434 = vadd.f32 %v2432, %v2433
        %v2435 = vrot.slane %v2434, 4
        %v2436 = vadd.f32 %v2434, %v2435
        %v2437 = vrot.slane %v2436, 2
        %v2438 = vadd.f32 %v2436, %v2437
        %v2439 = vrot.slane %v2438, 1
        %v2440 = vadd.f32 %v2438, %v2439
        %vm2441 = vcmask 57344
        %2442 = vst.msk [vmem:[%s267] sm:$0x1] %vm2441, %v2440
        %v2443 = vmul.f32 %v2339, %v2339
        %v2444 = vmul.f32 %v2340, %v2340
        %v2445 = vmul.f32 %v2341, %v2341
        %v2446 = vmul.f32 %v2342, %v2342
        %v2447 = vmul.f32 %v2343, %v2343
        %v2448 = vmul.f32 %v2344, %v2344
        %v2449 = vmul.f32 %v2345, %v2345
        %v2450 = vmul.f32 %v2346, %v2346
        %v2451 = vmul.f32 %v2347, %v2347
        %v2452 = vmul.f32 %v2348, %v2348
        %v2453 = vmul.f32 %v2349, %v2349
        %v2454 = vmul.f32 %v2350, %v2350
        %v2455 = vmul.f32 %v2351, %v2351
        %v2456 = vmul.f32 %v2352, %v2352
        %v2457 = vmul.f32 %v2353, %v2353
        %v2458 = vmul.f32 %v2354, %v2354
        %v2459 = vmul.f32 %v2355, %v2355
        %v2460 = vmul.f32 %v2356, %v2356
        %v2461 = vmul.f32 %v2357, %v2357
        %v2462 = vmul.f32 %v2358, %v2358
        %v2463 = vmul.f32 %v2359, %v2359
        %v2464 = vmul.f32 %v2360, %v2360
        %v2465 = vmul.f32 %v2361, %v2361
        %v2466 = vmul.f32 %v2362, %v2362
        %v2467 = vmul.f32 %v2363, %v2363
        %v2468 = vmul.f32 %v2364, %v2364
        %v2469 = vmul.f32 %v2365, %v2365
        %v2470 = vmul.f32 %v2366, %v2366
        %v2471 = vmul.f32 %v2367, %v2367
        %v2472 = vmul.f32 %v2368, %v2368
        %v2473 = vmul.f32 %v2369, %v2369
        %v2474 = vmul.f32 %v2370, %v2370
        %v2475 = vsel %vm2371, %v2443, 0.0
        %v2476 = vsel %vm2371, %v2444, 0.0
        %v2477 = vadd.f32 %v2475, %v2476
        %v2478 = vsel %vm2371, %v2445, 0.0
        %v2479 = vadd.f32 %v2477, %v2478
        %v2480 = vsel %vm2371, %v2446, 0.0
        %v2481 = vadd.f32 %v2479, %v2480
        %v2482 = vsel %vm2371, %v2447, 0.0
        %v2483 = vadd.f32 %v2481, %v2482
        %v2484 = vsel %vm2371, %v2448, 0.0
        %v2485 = vadd.f32 %v2483, %v2484
        %v2486 = vsel %vm2371, %v2449, 0.0
        %v2487 = vadd.f32 %v2485, %v2486
        %v2488 = vsel %vm2371, %v2450, 0.0
        %v2489 = vadd.f32 %v2487, %v2488
        %v2490 = vsel %vm2371, %v2451, 0.0
        %v2491 = vadd.f32 %v2489, %v2490
        %v2492 = vsel %vm2371, %v2452, 0.0
        %v2493 = vadd.f32 %v2491, %v2492
        %v2494 = vsel %vm2371, %v2453, 0.0
        %v2495 = vadd.f32 %v2493, %v2494
        %v2496 = vsel %vm2371, %v2454, 0.0
        %v2497 = vadd.f32 %v2495, %v2496
        %v2498 = vsel %vm2371, %v2455, 0.0
        %v2499 = vadd.f32 %v2497, %v2498
        %v2500 = vsel %vm2371, %v2456, 0.0
        %v2501 = vadd.f32 %v2499, %v2500
        %v2502 = vsel %vm2371, %v2457, 0.0
        %v2503 = vadd.f32 %v2501, %v2502
        %v2504 = vsel %vm2371, %v2458, 0.0
        %v2505 = vadd.f32 %v2503, %v2504
        %v2506 = vsel %vm2371, %v2459, 0.0
        %v2507 = vadd.f32 %v2505, %v2506
        %v2508 = vsel %vm2371, %v2460, 0.0
        %v2509 = vadd.f32 %v2507, %v2508
        %v2510 = vsel %vm2371, %v2461, 0.0
        %v2511 = vadd.f32 %v2509, %v2510
        %v2512 = vsel %vm2371, %v2462, 0.0
        %v2513 = vadd.f32 %v2511, %v2512
        %v2514 = vsel %vm2371, %v2463, 0.0
        %v2515 = vadd.f32 %v2513, %v2514
        %v2516 = vsel %vm2371, %v2464, 0.0
        %v2517 = vadd.f32 %v2515, %v2516
        %v2518 = vsel %vm2371, %v2465, 0.0
        %v2519 = vadd.f32 %v2517, %v2518
        %v2520 = vsel %vm2371, %v2466, 0.0
        %v2521 = vadd.f32 %v2519, %v2520
        %v2522 = vsel %vm2371, %v2467, 0.0
        %v2523 = vadd.f32 %v2521, %v2522
        %v2524 = vsel %vm2371, %v2468, 0.0
        %v2525 = vadd.f32 %v2523, %v2524
        %v2526 = vsel %vm2371, %v2469, 0.0
        %v2527 = vadd.f32 %v2525, %v2526
        %v2528 = vsel %vm2371, %v2470, 0.0
        %v2529 = vadd.f32 %v2527, %v2528
        %v2530 = vsel %vm2371, %v2471, 0.0
        %v2531 = vadd.f32 %v2529, %v2530
        %v2532 = vsel %vm2371, %v2472, 0.0
        %v2533 = vadd.f32 %v2531, %v2532
        %v2534 = vsel %vm2371, %v2473, 0.0
        %v2535 = vadd.f32 %v2533, %v2534
        %v2536 = vsel %vm2371, %v2474, 0.0
        %v2537 = vadd.f32 %v2535, %v2536
        %v2538 = vrot.slane %v2537, 4
        %v2539 = vadd.f32 %v2537, %v2538
        %v2540 = vrot.slane %v2539, 2
        %v2541 = vadd.f32 %v2539, %v2540
        %v2542 = vrot.slane %v2541, 1
        %v2543 = vadd.f32 %v2541, %v2542
        %2544 = vst.msk [vmem:[%s273] sm:$0x1] %vm2441, %v2543
        %s2545 = scalar_lea.vmem %s287, 24
        %2546 = vst.msk [vmem:[%s2545 + $0x1] sm:$0xff] %vm2371, %v2339
        %2547 = vst.msk [vmem:[%s2545 + $0x9] sm:$0xff] %vm2371, %v2340
        %2548 = vst.msk [vmem:[%s2545 + $0x19] sm:$0xff] %vm2371, %v2341
        %2549 = vst.msk [vmem:[%s2545 + $0x21] sm:$0xff] %vm2371, %v2342
        %2550 = vst.msk [vmem:[%s2545 + $0x31] sm:$0xff] %vm2371, %v2343
        %2551 = vst.msk [vmem:[%s2545 + $0x39] sm:$0xff] %vm2371, %v2344
        %2552 = vst.msk [vmem:[%s2545 + $0x49] sm:$0xff] %vm2371, %v2345
        %2553 = vst.msk [vmem:[%s2545 + $0x51] sm:$0xff] %vm2371, %v2346
        %2554 = vst.msk [vmem:[%s2545 + $0x61] sm:$0xff] %vm2371, %v2347
        %2555 = vst.msk [vmem:[%s2545 + $0x69] sm:$0xff] %vm2371, %v2348
        %2556 = vst.msk [vmem:[%s2545 + $0x79] sm:$0xff] %vm2371, %v2349
        %2557 = vst.msk [vmem:[%s2545 + $0x81] sm:$0xff] %vm2371, %v2350
        %2558 = vst.msk [vmem:[%s2545 + $0x91] sm:$0xff] %vm2371, %v2351
        %2559 = vst.msk [vmem:[%s2545 + $0x99] sm:$0xff] %vm2371, %v2352
        %2560 = vst.msk [vmem:[%s2545 + $0xa9] sm:$0xff] %vm2371, %v2353
        %2561 = vst.msk [vmem:[%s2545 + $0xb1] sm:$0xff] %vm2371, %v2354
        %2562 = vst.msk [vmem:[%s2545 + $0xc1] sm:$0xff] %vm2371, %v2355
        %2563 = vst.msk [vmem:[%s2545 + $0xc9] sm:$0xff] %vm2371, %v2356
        %2564 = vst.msk [vmem:[%s2545 + $0xd9] sm:$0xff] %vm2371, %v2357
        %2565 = vst.msk [vmem:[%s2545 + $0xe1] sm:$0xff] %vm2371, %v2358
        %2566 = vst.msk [vmem:[%s2545 + $0xf1] sm:$0xff] %vm2371, %v2359
        %2567 = vst.msk [vmem:[%s2545 + $0xf9] sm:$0xff] %vm2371, %v2360
        %2568 = vst.msk [vmem:[%s2545 + $0x109] sm:$0xff] %vm2371, %v2361
        %2569 = vst.msk [vmem:[%s2545 + $0x111] sm:$0xff] %vm2371, %v2362
        %2570 = vst.msk [vmem:[%s2545 + $0x121] sm:$0xff] %vm2371, %v2363
        %2571 = vst.msk [vmem:[%s2545 + $0x129] sm:$0xff] %vm2371, %v2364
        %2572 = vst.msk [vmem:[%s2545 + $0x139] sm:$0xff] %vm2371, %v2365
        %2573 = vst.msk [vmem:[%s2545 + $0x141] sm:$0xff] %vm2371, %v2366
        %2574 = vst.msk [vmem:[%s2545 + $0x151] sm:$0xff] %vm2371, %v2367
        %2575 = vst.msk [vmem:[%s2545 + $0x159] sm:$0xff] %vm2371, %v2368
        %2576 = vst.msk [vmem:[%s2545 + $0x169] sm:$0xff] %vm2371, %v2369
        %2577 = vst.msk [vmem:[%s2545 + $0x171] sm:$0xff] %vm2371, %v2370
        %p2578 = scmp.lt.s32.totalorder %s24, 1
        %s2579 = scalar_select %p2578, %s24, 1
        %s2580 = smul.addr %s2579, 54
        %s2581 = smul.addr %s2580, 8
        %s2582 = scalar_lea.vmem %s4, %s2581
        %s2583 = sand.u32 %s152, 1
        %s2584 = scalar_lea.sflag [#allocation3], %s2583
        %s2585 = sand.u32 %s152, 1
        %s2586 = scalar_lea.vmem [#allocation2], %s2585
        %s2587 = sand.u32 %s178, 1
        %s2588 = scalar_lea.sflag [#allocation5], %s2587
        %s2589 = sand.u32 %s178, 1
        %s2590 = scalar_lea.vmem [#allocation4], %s2589
        // Predicated region
        $region37: #{tpu_custom_call.1} parent=35 // pred_check
          %p2591 = pneg %p136
        $region38: #{tpu_custom_call.1} parent=35 // pred_check_branch
          %2593 = sbr.rel (%p2591) target = $region40
        $region39: #{tpu_custom_call.1} parent=35 // pred_region
          _
        $region40: #{tpu_custom_call.1} parent=35 // pred_fallthru
          _
        // Predicated region
        $region41: #{tpu_custom_call.1} parent=35 // pred_check
          %p2594 = pneg %p162
        $region42: #{tpu_custom_call.1} parent=35 // pred_check_branch
          %2596 = sbr.rel (%p2594) target = $region44
        $region43: #{tpu_custom_call.1} parent=35 // pred_region
          %2598 = vsyncadd %s2584, 0
          %s2599 = scalar_lea.hbm %s5, %s24
          %s2601 = sshll.u32 %s2586, 4
          %s2602 = int_to_ptr.vmem [resolvable:$true] %s2601
          %s2603 = sshll.u32 %s2599, 4
          %s2604 = int_to_ptr.hbm [resolvable:$true] %s2603
          %2606 = dma.vmem_to_hbm [thread:$0]  %s2602, 16, %s2604, %s2584
        $region44: #{tpu_custom_call.1} parent=35 // pred_fallthru
          _
        // Predicated region
        $region45: #{tpu_custom_call.1} parent=35 // pred_check
          %p2607 = pneg %p188
        $region46: #{tpu_custom_call.1} parent=35 // pred_check_branch
          %2609 = sbr.rel (%p2607) target = $region48
        $region47: #{tpu_custom_call.1} parent=35 // pred_region
          %2611 = vsyncadd %s2588, 0
          %s2612 = scalar_lea.hbm %s6, %s24
          %s2614 = sshll.u32 %s2590, 4
          %s2615 = int_to_ptr.vmem [resolvable:$true] %s2614
          %s2616 = sshll.u32 %s2612, 4
          %s2617 = int_to_ptr.hbm [resolvable:$true] %s2616
          %2619 = dma.vmem_to_hbm [thread:$0]  %s2615, 16, %s2617, %s2588
        $region48: #{tpu_custom_call.1} parent=35 // pred_fallthru
          _
      $region36: #{tpu_custom_call.1} parent=5 // pred_fallthru
        _
      %p2620 = scmp.le.s32.totalorder 2, %s19
      // Predicated region
      $region49: #{tpu_custom_call.1} parent=5 // pred_check
        %p2621 = pneg %p2620
      $region50: #{tpu_custom_call.1} parent=5 // pred_check_branch
        %2623 = sbr.rel (%p2621) target = $region52
      $region51: #{tpu_custom_call.1} parent=5 // pred_region
        %s2624 = ssub.s32 %s19, 2
        // Predicated region
        $region53: #{tpu_custom_call.1} parent=51 // pred_check
          %p2625 = pneg %p142
        $region54: #{tpu_custom_call.1} parent=51 // pred_check_branch
          %2627 = sbr.rel (%p2625) target = $region56
        $region55: #{tpu_custom_call.1} parent=51 // pred_region
          %p2628 = scmp.lt.s32.totalorder %s25, 1
          %s2629 = scalar_select %p2628, %s25, 1
          %s2630 = smul.addr %s2629, 54
          %s2631 = smul.addr %s2630, 8
          %s2632 = scalar_lea.vmem %s4, %s2631
        $region56: #{tpu_custom_call.1} parent=51 // pred_fallthru
          _
        // Predicated region
        $region57: #{tpu_custom_call.1} parent=51 // pred_check
          %p2633 = pneg %p168
        $region58: #{tpu_custom_call.1} parent=51 // pred_check_branch
          %2635 = sbr.rel (%p2633) target = $region60
        $region59: #{tpu_custom_call.1} parent=51 // pred_region
          %s2636 = sand.u32 %s153, 1
          %s2637 = scalar_lea.sflag [#allocation3], %s2636
          %s2638 = sand.u32 %s153, 1
          %s2639 = scalar_lea.vmem [#allocation2], %s2638
          %2641 = dma.done %s2637, 16
        $region60: #{tpu_custom_call.1} parent=51 // pred_fallthru
          _
        // Predicated region
        $region61: #{tpu_custom_call.1} parent=51 // pred_check
          %p2642 = pneg %p194
        $region62: #{tpu_custom_call.1} parent=51 // pred_check_branch
          %2644 = sbr.rel (%p2642) target = $region64
        $region63: #{tpu_custom_call.1} parent=51 // pred_region
          %s2645 = sand.u32 %s179, 1
          %s2646 = scalar_lea.sflag [#allocation5], %s2645
          %s2647 = sand.u32 %s179, 1
          %s2648 = scalar_lea.vmem [#allocation4], %s2647
          %2650 = dma.done %s2646, 16
        $region64: #{tpu_custom_call.1} parent=51 // pred_fallthru
          _
      $region52: #{tpu_custom_call.1} parent=5 // pred_fallthru
        _
    $region6: #{tpu_custom_call.1} parent=1 // loop_footer
      %s23 = sadd.s32 1, %s19
    $region7: #{tpu_custom_call.1} parent=1 // loop_footer_branch
      %18 = sbr.rel target = $region3
    $region8: #{tpu_custom_call.1} parent=1 // loop_exit
      _
    %2651 = vsyncpa [#allocation3], 1
    %s2652 = scalar_lea.sflag [#allocation3], 1
    %2653 = vsyncpa %s2652, 1
    %2654 = vsyncpa [#allocation5], 1
    %s2655 = scalar_lea.sflag [#allocation5], 1
    %2656 = vsyncpa %s2655, 1

</llo_original>
